<compile_context>
chip_gen: v7x
topology: tpu7x:2x2x1
jax: 0.10.0
libtpu: 0.0.40
codegen_flags: <defaults>
</compile_context>

<pallas_src>
import numpy as np
import jax
import jax.numpy as jnp
from jax.experimental import pallas as pl
from jax.experimental.pallas import tpu as pltpu

_VMEM = pl.BlockSpec(memory_space=pltpu.MemorySpace.VMEM)


# ---------------------------------------------------------------------------
# One-time parameter preparation (pure numpy, done outside jit)
# ---------------------------------------------------------------------------
def _banded_conv1(w1):
    """[32,1,3,3] -> [42, 512] : K = dh*14 + wc,  N = parity*256 + w*32 + co.

    Output column layout puts even/odd output-x in separate 256-lane halves so
    the width pool is an aligned lane-half max (lanes 192:256 / 448:512 are
    zero padding).
    """
    cout, _, k, _ = w1.shape                       # 32, 1, 3, 3
    m = np.zeros((k, 14, 512), np.float32)
    for dh in range(k):
        for ow in range(12):
            parity, w = ow % 2, ow // 2
            col = parity * 256 + w * 32
            for dw in range(k):
                m[dh, ow + dw, col:col + cout] = w1[:, 0, dh, dw]
    return m.reshape(k * 14, 512)


def _banded_conv2(w2):
    """[64,32,3,3] -> [3, 256, 256] : K = wc*32 + ci (rows >=192 zero),
    N = parity*128 + w*64 + co (even/odd output-x in separate 128-lane halves)."""
    cout, cin, k, _ = w2.shape                     # 64, 32, 3, 3
    m = np.zeros((k, 256, 256), np.float32)
    for dh in range(k):
        for ow in range(4):
            parity, w = ow % 2, ow // 2
            col = parity * 128 + w * 64
            for dw in range(k):
                wc = ow + dw
                m[dh, wc * cin:(wc + 1) * cin, col:col + cout] = w2[:, :, dh, dw].T
    return m


def prepare_params(params):
    (w1, b1, w2, b2, wf1, bf1, wf2, bf2, wf3, bf3) = [np.asarray(p, np.float32) for p in params]

    m1a = _banded_conv1(w1)                         # [42, 512]
    m2 = _banded_conv2(w2)                          # [3, 256, 256]

    b1t = np.zeros((1, 512), np.float32)            # matches conv1 output lane layout
    for p_ in range(2):
        for w in range(6):
            off = p_ * 256 + w * 32
            b1t[0, off:off + 32] = b1
    b2t = np.tile(b2, 4)[None, :]                   # [1, 256]  (4 x 64-lane groups)

    # Kernel feeds fc1 with lane L = h*128 + w*64 + c; torch expects feature
    # c*4 + h*2 + w (NCHW flatten).  Fold that into fc1's rows, pad N to 128.
    wf1p = np.transpose(wf1.reshape(120, 64, 2, 2), (2, 3, 1, 0)).reshape(256, 120)
    wf1p = np.pad(wf1p, ((0, 0), (0, 8)))           # [256, 128]
    bf1p = np.pad(bf1, (0, 8))[None, :]             # [1, 128]
    wf2p = np.pad(wf2.T, ((0, 8), (0, 44)))         # [128, 128]
    bf2p = np.pad(bf2, (0, 44))[None, :]            # [1, 128]
    wf3p = np.pad(wf3.T, ((0, 44), (0, 118)))       # [128, 128]
    bf3p = np.pad(bf3, (0, 118))[None, :]           # [1, 128]

    prepped = (m1a, b1t, m2, b2t, wf1p, bf1p, wf2p, bf2p, wf3p, bf3p)
    return tuple(jnp.asarray(a) for a in prepped)


# ---------------------------------------------------------------------------
# Fused forward: one pallas_call for the whole network, gridded over batch
# ---------------------------------------------------------------------------
def basenet_forward(x, prepped):
    (m1a, b1t, m2, b2t, wf1p, bf1p, wf2p, bf2p, wf3p, bf3p) = prepped

    x2 = x.reshape(-1, 14, 14)                      # torch x.view(-1,1,14,14)
    B = x2.shape[0]

    # Wrapper-side layout plumbing (tiny): stack the 3 kernel-row slices along
    # lanes (K-stacking) and split conv1 output rows by parity so the in-kernel
    # row pool is an aligned sublane-half max.  Rows 6,7 / 14,15 are zero pad.
    g = [x2[:, d:d + 11:2, :] for d in range(4)]            # each [B, 6, 14]
    lhs_e = jnp.concatenate([g[0], g[1], g[2]], axis=2)     # even output rows, [B,6,42]
    lhs_o = jnp.concatenate([g[1], g[2], g[3]], axis=2)     # odd  output rows, [B,6,42]
    zpad = jnp.zeros((B, 2, 42), x2.dtype)
    lhs = jnp.concatenate([lhs_e, zpad, lhs_o, zpad], axis=1)   # [B, 16, 42]

    Bt = 8 if B >= 8 else B                         # images per grid block
    nb = -(-B // Bt)
    Bp = nb * Bt
    if Bp != B:
        lhs = jnp.concatenate([lhs, jnp.zeros((Bp - B, 16, 42), lhs.dtype)], axis=0)

    def kernel(lhs_ref, m1_ref, b1_ref, m2_ref, b2_ref,
               wf1_ref, bf1_ref, wf2_ref, bf2_ref, wf3_ref, bf3_ref,
               o_ref, p2_ref):
        def dot(a, b):
            return jnp.dot(a, b, preferred_element_type=jnp.float32)

        b1 = b1_ref[...]                            # hoisted: read biases once per block
        b2 = b2_ref[...]

        for b in range(Bt):                         # small fixed unroll; iters independent
            # conv1 (single K-stacked dot): rows 0:8 = even oh, 8:16 = odd oh
            h1 = dot(lhs_ref[b], m1_ref[...])                       # [16, 512]
            # 2x2 pool, height: aligned sublane-half max;  + bias
            v1 = jnp.maximum(h1[0:8, :], h1[8:16, :]) + b1          # [8, 512]
            # 2x2 pool, width: aligned lane-half max; then ReLU -> p1 stays in regs
            p1 = jnp.maximum(jnp.maximum(v1[:, 0:256], v1[:, 256:512]), 0.0)  # [8, 256]
            # conv2: 3 banded dots (rows 6,7 of p1 are pad and never read)
            h2 = (dot(p1[0:4, :], m2_ref[0]) + dot(p1[1:5, :], m2_ref[1])
                  + dot(p1[2:6, :], m2_ref[2]) + b2)                # [4, 256]
            # 2x2 pool, width: aligned lane-half max
            c2 = jnp.maximum(h2[:, 0:128], h2[:, 128:256])          # [4, 128]
            # 2x2 pool, height + ReLU; pack [h=0 | h=1] halves into one 256-lane row
            p2_ref[b:b + 1, 0:128] = jnp.maximum(
                jnp.maximum(c2[0:1, :], c2[1:2, :]), 0.0)
            p2_ref[b:b + 1, 128:256] = jnp.maximum(
                jnp.maximum(c2[2:3, :], c2[3:4, :]), 0.0)

        # MLP over the whole block (fc weights pre-permuted & lane-padded to 128)
        p2 = p2_ref[...]                                            # [Bt, 256]
        y = jnp.maximum(dot(p2, wf1_ref[...]) + bf1_ref[...], 0.0)  # [Bt, 128]
        y = jnp.maximum(dot(y, wf2_ref[...]) + bf2_ref[...], 0.0)   # [Bt, 128]
        o_ref[...] = dot(y, wf3_ref[...]) + bf3_ref[...]            # [Bt, 128]

    out = pl.pallas_call(
        kernel,
        out_shape=jax.ShapeDtypeStruct((Bp, 128), jnp.float32),
        grid=(nb,),
        in_specs=[pl.BlockSpec((Bt, 16, 42), lambda i: (i, 0, 0))] + [_VMEM] * 10,
        out_specs=pl.BlockSpec((Bt, 128), lambda i: (i, 0)),
        scratch_shapes=[pltpu.VMEM((Bt, 256), jnp.float32)],        # packed conv2 features
        compiler_params=pltpu.CompilerParams(dimension_semantics=("parallel",)),
    )(lhs, m1a, b1t, m2, b2t, wf1p, bf1p, wf2p, bf2p, wf3p, bf3p)

    return out[:B, :10]


# ---------------------------------------------------------------------------
# Pure-JAX reference (mirrors the torch module exactly) and synthetic params
# ---------------------------------------------------------------------------
def ref_forward(x, params):
    (w1, b1, w2, b2, wf1, bf1, wf2, bf2, wf3, bf3) = params
    hp = jax.lax.Precision.HIGHEST
    x = x.reshape(-1, 1, 14, 14)

    def conv(h, w, b):
        _, _, H, W = h.shape
        k = w.shape[2]
        oh, ow = H - k + 1, W - k + 1
        out = jnp.zeros((h.shape[0], w.shape[0], oh, ow), jnp.float32)
        for dh in range(k):
            for dw in range(k):
                patch = h[:, :, dh:dh + oh, dw:dw + ow]
                out = out + jnp.einsum('bchw,oc->bohw', patch, w[:, :, dh, dw], precision=hp)
        return out + b[None, :, None, None]

    def pool(h):
        return jnp.maximum(jnp.maximum(h[:, :, 0::2, 0::2], h[:, :, 0::2, 1::2]),
                           jnp.maximum(h[:, :, 1::2, 0::2], h[:, :, 1::2, 1::2]))

    h = jnp.maximum(pool(conv(x, w1, b1)), 0.0)
    h = jnp.maximum(pool(conv(h, w2, b2)), 0.0)
    h = h.reshape(h.shape[0], -1)                   # NCHW flatten == torch view(-1,256)
    h = jnp.maximum(jnp.dot(h, wf1.T, precision=hp) + bf1, 0.0)
    h = jnp.maximum(jnp.dot(h, wf2.T, precision=hp) + bf2, 0.0)
    return jnp.dot(h, wf3.T, precision=hp) + bf3


def init_params(key):
    """Deterministic synthetic params with the same shapes as BaseNet.__init__."""
    ks = jax.random.split(key, 10)

    def u(k, shape, fan_in):
        bound = 1.0 / float(fan_in) ** 0.5
        return jax.random.uniform(k, shape, jnp.float32, -bound, bound)

    w1 = u(ks[0], (32, 1, 3, 3), 1 * 3 * 3)
    b1 = u(ks[1], (32,), 1 * 3 * 3)
    w2 = u(ks[2], (64, 32, 3, 3), 32 * 3 * 3)
    b2 = u(ks[3], (64,), 32 * 3 * 3)
    wf1 = u(ks[4], (120, 256), 256)
    bf1 = u(ks[5], (120,), 256)
    wf2 = u(ks[6], (84, 120), 120)
    bf2 = u(ks[7], (84,), 120)
    wf3 = u(ks[8], (10, 84), 84)
    bf3 = u(ks[9], (10,), 84)
    return (w1, b1, w2, b2, wf1, bf1, wf2, bf2, wf3, bf3)


if __name__ == "__main__":
    key = jax.random.PRNGKey(0)
    k_params, k_x = jax.random.split(key)
    params = init_params(k_params)
    prepped = prepare_params(params)                # one-time weight prep (outside jit)
    x = jax.random.normal(k_x, (2, 1, 14, 14), jnp.float32)   # NCHW, 14x14, 1 channel

    fwd = jax.jit(lambda xx: basenet_forward(xx, prepped))
    out = fwd(x)
    jax.block_until_ready(out)
    assert out.shape == (2, 10) and out.dtype == jnp.float32

    ref = ref_forward(x, params)
    # Tightened 5x vs previous revision; kept above f32-exact to stay robust to
    # MXU f32 multi-pass behaviour across TPU generations.
    assert bool(jnp.allclose(out, ref, atol=1e-2, rtol=1e-2))
    print("KERNEL_OK")
</pallas_src>

<mosaic_0001>
module attributes {stable_mosaic.version = 11 : i64} {
  func.func @kernel(%arg0: i32, %arg1: memref<2x16x42xf32, #tpu.memory_space<vmem>>, %arg2: memref<42x512xf32, #tpu.memory_space<vmem>>, %arg3: memref<1x512xf32, #tpu.memory_space<vmem>>, %arg4: memref<3x256x256xf32, #tpu.memory_space<vmem>>, %arg5: memref<1x256xf32, #tpu.memory_space<vmem>>, %arg6: memref<256x128xf32, #tpu.memory_space<vmem>>, %arg7: memref<1x128xf32, #tpu.memory_space<vmem>>, %arg8: memref<128x128xf32, #tpu.memory_space<vmem>>, %arg9: memref<1x128xf32, #tpu.memory_space<vmem>>, %arg10: memref<128x128xf32, #tpu.memory_space<vmem>>, %arg11: memref<1x128xf32, #tpu.memory_space<vmem>>, %arg12: memref<2x128xf32, #tpu.memory_space<vmem>>, %arg13: memref<2x256xf32, #tpu.memory_space<vmem>>) attributes {dimension_semantics = [#tpu.dimension_semantics<parallel>], iteration_bounds = array<i64: 1>, scalar_prefetch = 0 : i64, scratch_operands = 1 : i64, tpu.core_type = #tpu.core_type<tc>, window_params = [{transform_indices = @transform_0, window_bounds = array<i64: 2, 16, 42>}, {pipeline_mode = #tpu.pipeline_mode<synchronous>, transform_indices = @transform_1, window_bounds = array<i64: 42, 512>}, {pipeline_mode = #tpu.pipeline_mode<synchronous>, transform_indices = @transform_2, window_bounds = array<i64: 1, 512>}, {pipeline_mode = #tpu.pipeline_mode<synchronous>, transform_indices = @transform_3, window_bounds = array<i64: 3, 256, 256>}, {pipeline_mode = #tpu.pipeline_mode<synchronous>, transform_indices = @transform_4, window_bounds = array<i64: 1, 256>}, {pipeline_mode = #tpu.pipeline_mode<synchronous>, transform_indices = @transform_5, window_bounds = array<i64: 256, 128>}, {pipeline_mode = #tpu.pipeline_mode<synchronous>, transform_indices = @transform_6, window_bounds = array<i64: 1, 128>}, {pipeline_mode = #tpu.pipeline_mode<synchronous>, transform_indices = @transform_7, window_bounds = array<i64: 128, 128>}, {pipeline_mode = #tpu.pipeline_mode<synchronous>, transform_indices = @transform_8, window_bounds = array<i64: 1, 128>}, {pipeline_mode = #tpu.pipeline_mode<synchronous>, transform_indices = @transform_9, window_bounds = array<i64: 128, 128>}, {pipeline_mode = #tpu.pipeline_mode<synchronous>, transform_indices = @transform_10, window_bounds = array<i64: 1, 128>}, {transform_indices = @transform_11, window_bounds = array<i64: 2, 128>}]} {
    %c0 = arith.constant 0 : index
    %c0_0 = arith.constant 0 : index
    %0 = vector.load %arg3[%c0, %c0_0] : memref<1x512xf32, #tpu.memory_space<vmem>>, vector<1x512xf32>
    %c0_1 = arith.constant 0 : index
    %c0_2 = arith.constant 0 : index
    %1 = vector.load %arg5[%c0_1, %c0_2] : memref<1x256xf32, #tpu.memory_space<vmem>>, vector<1x256xf32>
    %c0_3 = arith.constant 0 : index
    %c0_4 = arith.constant 0 : index
    %c0_5 = arith.constant 0 : index
    %2 = vector.load %arg1[%c0_3, %c0_4, %c0_5] : memref<2x16x42xf32, #tpu.memory_space<vmem>>, vector<1x16x42xf32>
    %3 = vector.shape_cast %2 : vector<1x16x42xf32> to vector<16x42xf32>
    %c0_6 = arith.constant 0 : index
    %c0_7 = arith.constant 0 : index
    %4 = vector.load %arg2[%c0_6, %c0_7] : memref<42x512xf32, #tpu.memory_space<vmem>>, vector<42x512xf32>
    %cst = arith.constant dense<0.000000e+00> : vector<16x512xf32>
    %5 = tpu.matmul %3, %4, %cst {dimension_numbers = #tpu.dot_dimension_numbers<[1], [0], [0], [1], [0, 0, 1, 1], [], []>} : vector<16x42xf32>, vector<42x512xf32>, vector<16x512xf32> -> vector<16x512xf32>
    %6 = vector.extract_strided_slice %5 {offsets = [0, 0], sizes = [8, 512], strides = [1, 1]} : vector<16x512xf32> to vector<8x512xf32>
    %7 = vector.extract_strided_slice %5 {offsets = [8, 0], sizes = [8, 512], strides = [1, 1]} : vector<16x512xf32> to vector<8x512xf32>
    %8 = arith.maximumf %6, %7 : vector<8x512xf32>
    %9 = vector.broadcast %0 : vector<1x512xf32> to vector<8x512xf32>
    %10 = arith.addf %8, %9 : vector<8x512xf32>
    %11 = vector.extract_strided_slice %10 {offsets = [0, 0], sizes = [8, 256], strides = [1, 1]} : vector<8x512xf32> to vector<8x256xf32>
    %12 = vector.extract_strided_slice %10 {offsets = [0, 256], sizes = [8, 256], strides = [1, 1]} : vector<8x512xf32> to vector<8x256xf32>
    %13 = arith.maximumf %11, %12 : vector<8x256xf32>
    %cst_8 = arith.constant 0.000000e+00 : f32
    %14 = vector.broadcast %cst_8 : f32 to vector<8x256xf32>
    %15 = arith.maximumf %13, %14 : vector<8x256xf32>
    %16 = vector.extract_strided_slice %15 {offsets = [0, 0], sizes = [4, 256], strides = [1, 1]} : vector<8x256xf32> to vector<4x256xf32>
    %c0_9 = arith.constant 0 : index
    %c0_10 = arith.constant 0 : index
    %c0_11 = arith.constant 0 : index
    %17 = vector.load %arg4[%c0_9, %c0_10, %c0_11] : memref<3x256x256xf32, #tpu.memory_space<vmem>>, vector<1x256x256xf32>
    %18 = vector.shape_cast %17 : vector<1x256x256xf32> to vector<256x256xf32>
    %cst_12 = arith.constant dense<0.000000e+00> : vector<4x256xf32>
    %19 = tpu.matmul %16, %18, %cst_12 {dimension_numbers = #tpu.dot_dimension_numbers<[1], [0], [0], [1], [0, 0, 1, 1], [], []>} : vector<4x256xf32>, vector<256x256xf32>, vector<4x256xf32> -> vector<4x256xf32>
    %20 = vector.extract_strided_slice %15 {offsets = [1, 0], sizes = [4, 256], strides = [1, 1]} : vector<8x256xf32> to vector<4x256xf32>
    %c1 = arith.constant 1 : index
    %c0_13 = arith.constant 0 : index
    %c0_14 = arith.constant 0 : index
    %21 = vector.load %arg4[%c1, %c0_13, %c0_14] : memref<3x256x256xf32, #tpu.memory_space<vmem>>, vector<1x256x256xf32>
    %22 = vector.shape_cast %21 : vector<1x256x256xf32> to vector<256x256xf32>
    %cst_15 = arith.constant dense<0.000000e+00> : vector<4x256xf32>
    %23 = tpu.matmul %20, %22, %cst_15 {dimension_numbers = #tpu.dot_dimension_numbers<[1], [0], [0], [1], [0, 0, 1, 1], [], []>} : vector<4x256xf32>, vector<256x256xf32>, vector<4x256xf32> -> vector<4x256xf32>
    %24 = arith.addf %19, %23 : vector<4x256xf32>
    %25 = vector.extract_strided_slice %15 {offsets = [2, 0], sizes = [4, 256], strides = [1, 1]} : vector<8x256xf32> to vector<4x256xf32>
    %c2 = arith.constant 2 : index
    %c0_16 = arith.constant 0 : index
    %c0_17 = arith.constant 0 : index
    %26 = vector.load %arg4[%c2, %c0_16, %c0_17] : memref<3x256x256xf32, #tpu.memory_space<vmem>>, vector<1x256x256xf32>
    %27 = vector.shape_cast %26 : vector<1x256x256xf32> to vector<256x256xf32>
    %cst_18 = arith.constant dense<0.000000e+00> : vector<4x256xf32>
    %28 = tpu.matmul %25, %27, %cst_18 {dimension_numbers = #tpu.dot_dimension_numbers<[1], [0], [0], [1], [0, 0, 1, 1], [], []>} : vector<4x256xf32>, vector<256x256xf32>, vector<4x256xf32> -> vector<4x256xf32>
    %29 = arith.addf %24, %28 : vector<4x256xf32>
    %30 = vector.broadcast %1 : vector<1x256xf32> to vector<4x256xf32>
    %31 = arith.addf %29, %30 : vector<4x256xf32>
    %32 = vector.extract_strided_slice %31 {offsets = [0, 0], sizes = [4, 128], strides = [1, 1]} : vector<4x256xf32> to vector<4x128xf32>
    %33 = vector.extract_strided_slice %31 {offsets = [0, 128], sizes = [4, 128], strides = [1, 1]} : vector<4x256xf32> to vector<4x128xf32>
    %34 = arith.maximumf %32, %33 : vector<4x128xf32>
    %35 = vector.extract_strided_slice %34 {offsets = [0, 0], sizes = [1, 128], strides = [1, 1]} : vector<4x128xf32> to vector<1x128xf32>
    %36 = vector.extract_strided_slice %34 {offsets = [1, 0], sizes = [1, 128], strides = [1, 1]} : vector<4x128xf32> to vector<1x128xf32>
    %37 = arith.maximumf %35, %36 : vector<1x128xf32>
    %cst_19 = arith.constant 0.000000e+00 : f32
    %38 = vector.broadcast %cst_19 : f32 to vector<1x128xf32>
    %39 = arith.maximumf %37, %38 : vector<1x128xf32>
    %c0_20 = arith.constant 0 : index
    %c0_21 = arith.constant 0 : index
    %40 = vector.load %arg13[%c0_20, %c0_21] : memref<2x256xf32, #tpu.memory_space<vmem>>, vector<1x128xf32>
    tpu.vector_store %arg13[%c0_20, %c0_21], %39 {strides = array<i32>} : memref<2x256xf32, #tpu.memory_space<vmem>>, vector<1x128xf32>,
    %41 = vector.extract_strided_slice %34 {offsets = [2, 0], sizes = [1, 128], strides = [1, 1]} : vector<4x128xf32> to vector<1x128xf32>
    %42 = vector.extract_strided_slice %34 {offsets = [3, 0], sizes = [1, 128], strides = [1, 1]} : vector<4x128xf32> to vector<1x128xf32>
    %43 = arith.maximumf %41, %42 : vector<1x128xf32>
    %cst_22 = arith.constant 0.000000e+00 : f32
    %44 = vector.broadcast %cst_22 : f32 to vector<1x128xf32>
    %45 = arith.maximumf %43, %44 : vector<1x128xf32>
    %c0_23 = arith.constant 0 : index
    %c128 = arith.constant 128 : index
    %46 = vector.load %arg13[%c0_23, %c128] : memref<2x256xf32, #tpu.memory_space<vmem>>, vector<1x128xf32>
    tpu.vector_store %arg13[%c0_23, %c128], %45 {strides = array<i32>} : memref<2x256xf32, #tpu.memory_space<vmem>>, vector<1x128xf32>,
    %c1_24 = arith.constant 1 : index
    %c0_25 = arith.constant 0 : index
    %c0_26 = arith.constant 0 : index
    %47 = vector.load %arg1[%c1_24, %c0_25, %c0_26] : memref<2x16x42xf32, #tpu.memory_space<vmem>>, vector<1x16x42xf32>
    %48 = vector.shape_cast %47 : vector<1x16x42xf32> to vector<16x42xf32>
    %c0_27 = arith.constant 0 : index
    %c0_28 = arith.constant 0 : index
    %49 = vector.load %arg2[%c0_27, %c0_28] : memref<42x512xf32, #tpu.memory_space<vmem>>, vector<42x512xf32>
    %cst_29 = arith.constant dense<0.000000e+00> : vector<16x512xf32>
    %50 = tpu.matmul %48, %49, %cst_29 {dimension_numbers = #tpu.dot_dimension_numbers<[1], [0], [0], [1], [0, 0, 1, 1], [], []>} : vector<16x42xf32>, vector<42x512xf32>, vector<16x512xf32> -> vector<16x512xf32>
    %51 = vector.extract_strided_slice %50 {offsets = [0, 0], sizes = [8, 512], strides = [1, 1]} : vector<16x512xf32> to vector<8x512xf32>
    %52 = vector.extract_strided_slice %50 {offsets = [8, 0], sizes = [8, 512], strides = [1, 1]} : vector<16x512xf32> to vector<8x512xf32>
    %53 = arith.maximumf %51, %52 : vector<8x512xf32>
    %54 = vector.broadcast %0 : vector<1x512xf32> to vector<8x512xf32>
    %55 = arith.addf %53, %54 : vector<8x512xf32>
    %56 = vector.extract_strided_slice %55 {offsets = [0, 0], sizes = [8, 256], strides = [1, 1]} : vector<8x512xf32> to vector<8x256xf32>
    %57 = vector.extract_strided_slice %55 {offsets = [0, 256], sizes = [8, 256], strides = [1, 1]} : vector<8x512xf32> to vector<8x256xf32>
    %58 = arith.maximumf %56, %57 : vector<8x256xf32>
    %cst_30 = arith.constant 0.000000e+00 : f32
    %59 = vector.broadcast %cst_30 : f32 to vector<8x256xf32>
    %60 = arith.maximumf %58, %59 : vector<8x256xf32>
    %61 = vector.extract_strided_slice %60 {offsets = [0, 0], sizes = [4, 256], strides = [1, 1]} : vector<8x256xf32> to vector<4x256xf32>
    %c0_31 = arith.constant 0 : index
    %c0_32 = arith.constant 0 : index
    %c0_33 = arith.constant 0 : index
    %62 = vector.load %arg4[%c0_31, %c0_32, %c0_33] : memref<3x256x256xf32, #tpu.memory_space<vmem>>, vector<1x256x256xf32>
    %63 = vector.shape_cast %62 : vector<1x256x256xf32> to vector<256x256xf32>
    %cst_34 = arith.constant dense<0.000000e+00> : vector<4x256xf32>
    %64 = tpu.matmul %61, %63, %cst_34 {dimension_numbers = #tpu.dot_dimension_numbers<[1], [0], [0], [1], [0, 0, 1, 1], [], []>} : vector<4x256xf32>, vector<256x256xf32>, vector<4x256xf32> -> vector<4x256xf32>
    %65 = vector.extract_strided_slice %60 {offsets = [1, 0], sizes = [4, 256], strides = [1, 1]} : vector<8x256xf32> to vector<4x256xf32>
    %c1_35 = arith.constant 1 : index
    %c0_36 = arith.constant 0 : index
    %c0_37 = arith.constant 0 : index
    %66 = vector.load %arg4[%c1_35, %c0_36, %c0_37] : memref<3x256x256xf32, #tpu.memory_space<vmem>>, vector<1x256x256xf32>
    %67 = vector.shape_cast %66 : vector<1x256x256xf32> to vector<256x256xf32>
    %cst_38 = arith.constant dense<0.000000e+00> : vector<4x256xf32>
    %68 = tpu.matmul %65, %67, %cst_38 {dimension_numbers = #tpu.dot_dimension_numbers<[1], [0], [0], [1], [0, 0, 1, 1], [], []>} : vector<4x256xf32>, vector<256x256xf32>, vector<4x256xf32> -> vector<4x256xf32>
    %69 = arith.addf %64, %68 : vector<4x256xf32>
    %70 = vector.extract_strided_slice %60 {offsets = [2, 0], sizes = [4, 256], strides = [1, 1]} : vector<8x256xf32> to vector<4x256xf32>
    %c2_39 = arith.constant 2 : index
    %c0_40 = arith.constant 0 : index
    %c0_41 = arith.constant 0 : index
    %71 = vector.load %arg4[%c2_39, %c0_40, %c0_41] : memref<3x256x256xf32, #tpu.memory_space<vmem>>, vector<1x256x256xf32>
    %72 = vector.shape_cast %71 : vector<1x256x256xf32> to vector<256x256xf32>
    %cst_42 = arith.constant dense<0.000000e+00> : vector<4x256xf32>
    %73 = tpu.matmul %70, %72, %cst_42 {dimension_numbers = #tpu.dot_dimension_numbers<[1], [0], [0], [1], [0, 0, 1, 1], [], []>} : vector<4x256xf32>, vector<256x256xf32>, vector<4x256xf32> -> vector<4x256xf32>
    %74 = arith.addf %69, %73 : vector<4x256xf32>
    %75 = vector.broadcast %1 : vector<1x256xf32> to vector<4x256xf32>
    %76 = arith.addf %74, %75 : vector<4x256xf32>
    %77 = vector.extract_strided_slice %76 {offsets = [0, 0], sizes = [4, 128], strides = [1, 1]} : vector<4x256xf32> to vector<4x128xf32>
    %78 = vector.extract_strided_slice %76 {offsets = [0, 128], sizes = [4, 128], strides = [1, 1]} : vector<4x256xf32> to vector<4x128xf32>
    %79 = arith.maximumf %77, %78 : vector<4x128xf32>
    %80 = vector.extract_strided_slice %79 {offsets = [0, 0], sizes = [1, 128], strides = [1, 1]} : vector<4x128xf32> to vector<1x128xf32>
    %81 = vector.extract_strided_slice %79 {offsets = [1, 0], sizes = [1, 128], strides = [1, 1]} : vector<4x128xf32> to vector<1x128xf32>
    %82 = arith.maximumf %80, %81 : vector<1x128xf32>
    %cst_43 = arith.constant 0.000000e+00 : f32
    %83 = vector.broadcast %cst_43 : f32 to vector<1x128xf32>
    %84 = arith.maximumf %82, %83 : vector<1x128xf32>
    %c1_44 = arith.constant 1 : index
    %c0_45 = arith.constant 0 : index
    %85 = vector.load %arg13[%c1_44, %c0_45] : memref<2x256xf32, #tpu.memory_space<vmem>>, vector<1x128xf32>
    tpu.vector_store %arg13[%c1_44, %c0_45], %84 {strides = array<i32>} : memref<2x256xf32, #tpu.memory_space<vmem>>, vector<1x128xf32>,
    %86 = vector.extract_strided_slice %79 {offsets = [2, 0], sizes = [1, 128], strides = [1, 1]} : vector<4x128xf32> to vector<1x128xf32>
    %87 = vector.extract_strided_slice %79 {offsets = [3, 0], sizes = [1, 128], strides = [1, 1]} : vector<4x128xf32> to vector<1x128xf32>
    %88 = arith.maximumf %86, %87 : vector<1x128xf32>
    %cst_46 = arith.constant 0.000000e+00 : f32
    %89 = vector.broadcast %cst_46 : f32 to vector<1x128xf32>
    %90 = arith.maximumf %88, %89 : vector<1x128xf32>
    %c1_47 = arith.constant 1 : index
    %c128_48 = arith.constant 128 : index
    %91 = vector.load %arg13[%c1_47, %c128_48] : memref<2x256xf32, #tpu.memory_space<vmem>>, vector<1x128xf32>
    tpu.vector_store %arg13[%c1_47, %c128_48], %90 {strides = array<i32>} : memref<2x256xf32, #tpu.memory_space<vmem>>, vector<1x128xf32>,
    %c0_49 = arith.constant 0 : index
    %c0_50 = arith.constant 0 : index
    %92 = vector.load %arg13[%c0_49, %c0_50] : memref<2x256xf32, #tpu.memory_space<vmem>>, vector<2x256xf32>
    %c0_51 = arith.constant 0 : index
    %c0_52 = arith.constant 0 : index
    %93 = vector.load %arg6[%c0_51, %c0_52] : memref<256x128xf32, #tpu.memory_space<vmem>>, vector<256x128xf32>
    %cst_53 = arith.constant dense<0.000000e+00> : vector<2x128xf32>
    %94 = tpu.matmul %92, %93, %cst_53 {dimension_numbers = #tpu.dot_dimension_numbers<[1], [0], [0], [1], [0, 0, 1, 1], [], []>} : vector<2x256xf32>, vector<256x128xf32>, vector<2x128xf32> -> vector<2x128xf32>
    %c0_54 = arith.constant 0 : index
    %c0_55 = arith.constant 0 : index
    %95 = vector.load %arg7[%c0_54, %c0_55] : memref<1x128xf32, #tpu.memory_space<vmem>>, vector<1x128xf32>
    %96 = vector.broadcast %95 : vector<1x128xf32> to vector<2x128xf32>
    %97 = arith.addf %94, %96 : vector<2x128xf32>
    %cst_56 = arith.constant 0.000000e+00 : f32
    %98 = vector.broadcast %cst_56 : f32 to vector<2x128xf32>
    %99 = arith.maximumf %97, %98 : vector<2x128xf32>
    %c0_57 = arith.constant 0 : index
    %c0_58 = arith.constant 0 : index
    %100 = vector.load %arg8[%c0_57, %c0_58] : memref<128x128xf32, #tpu.memory_space<vmem>>, vector<128x128xf32>
    %cst_59 = arith.constant dense<0.000000e+00> : vector<2x128xf32>
    %101 = tpu.matmul %99, %100, %cst_59 {dimension_numbers = #tpu.dot_dimension_numbers<[1], [0], [0], [1], [0, 0, 1, 1], [], []>} : vector<2x128xf32>, vector<128x128xf32>, vector<2x128xf32> -> vector<2x128xf32>
    %c0_60 = arith.constant 0 : index
    %c0_61 = arith.constant 0 : index
    %102 = vector.load %arg9[%c0_60, %c0_61] : memref<1x128xf32, #tpu.memory_space<vmem>>, vector<1x128xf32>
    %103 = vector.broadcast %102 : vector<1x128xf32> to vector<2x128xf32>
    %104 = arith.addf %101, %103 : vector<2x128xf32>
    %cst_62 = arith.constant 0.000000e+00 : f32
    %105 = vector.broadcast %cst_62 : f32 to vector<2x128xf32>
    %106 = arith.maximumf %104, %105 : vector<2x128xf32>
    %c0_63 = arith.constant 0 : index
    %c0_64 = arith.constant 0 : index
    %107 = vector.load %arg10[%c0_63, %c0_64] : memref<128x128xf32, #tpu.memory_space<vmem>>, vector<128x128xf32>
    %cst_65 = arith.constant dense<0.000000e+00> : vector<2x128xf32>
    %108 = tpu.matmul %106, %107, %cst_65 {dimension_numbers = #tpu.dot_dimension_numbers<[1], [0], [0], [1], [0, 0, 1, 1], [], []>} : vector<2x128xf32>, vector<128x128xf32>, vector<2x128xf32> -> vector<2x128xf32>
    %c0_66 = arith.constant 0 : index
    %c0_67 = arith.constant 0 : index
    %109 = vector.load %arg11[%c0_66, %c0_67] : memref<1x128xf32, #tpu.memory_space<vmem>>, vector<1x128xf32>
    %110 = vector.broadcast %109 : vector<1x128xf32> to vector<2x128xf32>
    %111 = arith.addf %108, %110 : vector<2x128xf32>
    %c0_68 = arith.constant 0 : index
    %c0_69 = arith.constant 0 : index
    %112 = vector.load %arg12[%c0_68, %c0_69] : memref<2x128xf32, #tpu.memory_space<vmem>>, vector<2x128xf32>
    tpu.vector_store %arg12[%c0_68, %c0_69], %111 {strides = array<i32>} : memref<2x128xf32, #tpu.memory_space<vmem>>, vector<2x128xf32>,
    return
  }
  func.func @transform_0(%arg0: i32) -> (i32, i32, i32) {
    %c0_i32 = arith.constant 0 : i32
    %c0_i32_0 = arith.constant 0 : i32
    %c0_i32_1 = arith.constant 0 : i32
    return %arg0, %c0_i32, %c0_i32_0 : i32, i32, i32
  }
  func.func @transform_1(%arg0: i32) -> (i32, i32) {
    %c0_i32 = arith.constant 0 : i32
    %c0_i32_0 = arith.constant 0 : i32
    %c0_i32_1 = arith.constant 0 : i32
    return %c0_i32, %c0_i32_0 : i32, i32
  }
  func.func @transform_2(%arg0: i32) -> (i32, i32) {
    %c0_i32 = arith.constant 0 : i32
    %c0_i32_0 = arith.constant 0 : i32
    %c0_i32_1 = arith.constant 0 : i32
    return %c0_i32, %c0_i32_0 : i32, i32
  }
  func.func @transform_3(%arg0: i32) -> (i32, i32, i32) {
    %c0_i32 = arith.constant 0 : i32
    %c0_i32_0 = arith.constant 0 : i32
    %c0_i32_1 = arith.constant 0 : i32
    %c0_i32_2 = arith.constant 0 : i32
    return %c0_i32, %c0_i32_0, %c0_i32_1 : i32, i32, i32
  }
  func.func @transform_4(%arg0: i32) -> (i32, i32) {
    %c0_i32 = arith.constant 0 : i32
    %c0_i32_0 = arith.constant 0 : i32
    %c0_i32_1 = arith.constant 0 : i32
    return %c0_i32, %c0_i32_0 : i32, i32
  }
  func.func @transform_5(%arg0: i32) -> (i32, i32) {
    %c0_i32 = arith.constant 0 : i32
    %c0_i32_0 = arith.constant 0 : i32
    %c0_i32_1 = arith.constant 0 : i32
    return %c0_i32, %c0_i32_0 : i32, i32
  }
  func.func @transform_6(%arg0: i32) -> (i32, i32) {
    %c0_i32 = arith.constant 0 : i32
    %c0_i32_0 = arith.constant 0 : i32
    %c0_i32_1 = arith.constant 0 : i32
    return %c0_i32, %c0_i32_0 : i32, i32
  }
  func.func @transform_7(%arg0: i32) -> (i32, i32) {
    %c0_i32 = arith.constant 0 : i32
    %c0_i32_0 = arith.constant 0 : i32
    %c0_i32_1 = arith.constant 0 : i32
    return %c0_i32, %c0_i32_0 : i32, i32
  }
  func.func @transform_8(%arg0: i32) -> (i32, i32) {
    %c0_i32 = arith.constant 0 : i32
    %c0_i32_0 = arith.constant 0 : i32
    %c0_i32_1 = arith.constant 0 : i32
    return %c0_i32, %c0_i32_0 : i32, i32
  }
  func.func @transform_9(%arg0: i32) -> (i32, i32) {
    %c0_i32 = arith.constant 0 : i32
    %c0_i32_0 = arith.constant 0 : i32
    %c0_i32_1 = arith.constant 0 : i32
    return %c0_i32, %c0_i32_0 : i32, i32
  }
  func.func @transform_10(%arg0: i32) -> (i32, i32) {
    %c0_i32 = arith.constant 0 : i32
    %c0_i32_0 = arith.constant 0 : i32
    %c0_i32_1 = arith.constant 0 : i32
    return %c0_i32, %c0_i32_0 : i32, i32
  }
  func.func @transform_11(%arg0: i32) -> (i32, i32) {
    %c0_i32 = arith.constant 0 : i32
    %c0_i32_0 = arith.constant 0 : i32
    return %arg0, %c0_i32 : i32, i32
  }
}

</mosaic_0001>

<llo_original>
// kernel: _lambda_.1
$region0: #{_lambda_.1}
  #allocation0 [shape = 'u32[]', space=smem, size = 0x4, offset = 0x4, fixed_abs, tag = 'smem constant byte address 0x4 - core index']
  #allocation1 [shape = 'u32[144,128]{1,0:T(1,128)}', space=vmem, size = 0x12000, scoped, tag = 'internal scratch']
  #allocation2 [shape = 'f32[2,256]{1,0:T(2,128)}', space=vmem, size = 0x800, scoped, tag = 'scratch operand']
  %s0 = inlined_call_operand.vmem [shape: f32[2,16,42], index: 0, kind: input, shape index: {}]
  %s1 = inlined_call_operand.hbm [shape: f32[42,512], index: 1, kind: input, shape index: {}]
  %s2 = inlined_call_operand.vmem [shape: f32[1,512], index: 2, kind: input, shape index: {}]
  %s3 = inlined_call_operand.hbm [shape: f32[3,256,256], index: 3, kind: input, shape index: {}]
  %s4 = inlined_call_operand.vmem [shape: f32[1,256], index: 4, kind: input, shape index: {}]
  %s5 = inlined_call_operand.vmem [shape: f32[256,128], index: 5, kind: input, shape index: {}]
  %s6 = inlined_call_operand.vmem [shape: f32[1,128], index: 6, kind: input, shape index: {}]
  %s7 = inlined_call_operand.hbm [shape: f32[128,128], index: 7, kind: input, shape index: {}]
  %s8 = inlined_call_operand.vmem [shape: f32[1,128], index: 8, kind: input, shape index: {}]
  %s9 = inlined_call_operand.vmem [shape: f32[128,128], index: 9, kind: input, shape index: {}]
  %s10 = inlined_call_operand.vmem [shape: f32[1,128], index: 10, kind: input, shape index: {}]
  %s11 = inlined_call_operand.hbm [shape: f32[2,128], index: 11, kind: output, shape index: {}]
  %s12 = sld [smem:[#allocation0]]
  $region66: #{_lambda_.1} parent=0
    _
  %s14 = ssub.s32 1, %s12
  %s15 = scalar_select 0, %s14, %s12
  $region1: #{_lambda_.1} parent=0
    #allocation3 [shape = 'u8[98304]{0}', space=vmem, size = 0x18000, scoped, tag = 'input window, operand 1, single buffered']
    #allocation4 [shape = 's32[1]{0}', space=sflag, size = 0x4, scoped, tag = 'scoped memory for _lambda_.1']
    #allocation5 [shape = 's32[1]{0}', space=sflag, size = 0x4, scoped, tag = 'scoped memory for _lambda_.1']
    #allocation6 [shape = 'u8[786432]{0}', space=vmem, size = 0xc0000, scoped, tag = 'input window, operand 3, single buffered']
    #allocation7 [shape = 's32[1]{0}', space=sflag, size = 0x4, scoped, tag = 'scoped memory for _lambda_.1']
    #allocation8 [shape = 'u8[65536]{0}', space=vmem, size = 0x10000, scoped, tag = 'input window, operand 7, single buffered']
    #allocation9 [shape = 'u8[1024]{0}', space=vmem, size = 0x400, scoped, tag = 'output window, operand 0, single buffered']
    %16 = vsyncpa [#allocation4], 0
    %17 = vsyncpa [#allocation7], 0
    %18 = vsyncpa [#allocation5], 0
    // Predicated region
    $region2: #{_lambda_.1} parent=1 // pred_check
      _
    $region3: #{_lambda_.1} parent=1 // pred_check_branch
      %20 = sbr.rel (0) target = $region5
    $region4: #{_lambda_.1} parent=1 // pred_region
      _
    $region5: #{_lambda_.1} parent=1 // pred_fallthru
      _
    // Predicated region
    $region6: #{_lambda_.1} parent=1 // pred_check
      _
    $region7: #{_lambda_.1} parent=1 // pred_check_branch
      %22 = sbr.rel (0) target = $region9
    $region8: #{_lambda_.1} parent=1 // pred_region
      %s24 = ssub.s32 3072, 3072
      %25 = vsyncadd [#allocation4], %s24
      %s26 = sshll.u32 [#allocation3], 4
      %s27 = int_to_ptr.vmem [resolvable:$true] %s26
      %32 = dma.hbm_to_vmem [thread:$0]  %s1, 3072, %s27, [#allocation4], 512, 512, 32
    $region9: #{_lambda_.1} parent=1 // pred_fallthru
      _
    // Predicated region
    $region10: #{_lambda_.1} parent=1 // pred_check
      _
    $region11: #{_lambda_.1} parent=1 // pred_check_branch
      %34 = sbr.rel (0) target = $region13
    $region12: #{_lambda_.1} parent=1 // pred_region
      _
    $region13: #{_lambda_.1} parent=1 // pred_fallthru
      _
    // Predicated region
    $region14: #{_lambda_.1} parent=1 // pred_check
      _
    $region15: #{_lambda_.1} parent=1 // pred_check_branch
      %36 = sbr.rel (0) target = $region17
    $region16: #{_lambda_.1} parent=1 // pred_region
      %s38 = ssub.s32 24576, 24576
      %39 = vsyncadd [#allocation7], %s38
      %s40 = sshll.u32 [#allocation6], 4
      %s41 = int_to_ptr.vmem [resolvable:$true] %s40
      %46 = dma.hbm_to_vmem [thread:$0]  %s3, 24576, %s41, [#allocation7], 256, 256, 16
    $region17: #{_lambda_.1} parent=1 // pred_fallthru
      _
    // Predicated region
    $region18: #{_lambda_.1} parent=1 // pred_check
      _
    $region19: #{_lambda_.1} parent=1 // pred_check_branch
      %48 = sbr.rel (0) target = $region21
    $region20: #{_lambda_.1} parent=1 // pred_region
      _
    $region21: #{_lambda_.1} parent=1 // pred_fallthru
      _
    // Predicated region
    $region22: #{_lambda_.1} parent=1 // pred_check
      _
    $region23: #{_lambda_.1} parent=1 // pred_check_branch
      %50 = sbr.rel (0) target = $region25
    $region24: #{_lambda_.1} parent=1 // pred_region
      _
    $region25: #{_lambda_.1} parent=1 // pred_fallthru
      _
    // Predicated region
    $region26: #{_lambda_.1} parent=1 // pred_check
      _
    $region27: #{_lambda_.1} parent=1 // pred_check_branch
      %52 = sbr.rel (0) target = $region29
    $region28: #{_lambda_.1} parent=1 // pred_region
      _
    $region29: #{_lambda_.1} parent=1 // pred_fallthru
      _
    // Predicated region
    $region30: #{_lambda_.1} parent=1 // pred_check
      _
    $region31: #{_lambda_.1} parent=1 // pred_check_branch
      %54 = sbr.rel (0) target = $region33
    $region32: #{_lambda_.1} parent=1 // pred_region
      %s56 = ssub.s32 2048, 2048
      %57 = vsyncadd [#allocation7], %s56
      %s58 = sshll.u32 [#allocation8], 4
      %s59 = int_to_ptr.vmem [resolvable:$true] %s58
      %64 = dma.hbm_to_vmem [thread:$0]  %s7, 2048, %s59, [#allocation7], 128, 128, 8
    $region33: #{_lambda_.1} parent=1 // pred_fallthru
      _
    // Predicated region
    $region34: #{_lambda_.1} parent=1 // pred_check
      _
    $region35: #{_lambda_.1} parent=1 // pred_check_branch
      %66 = sbr.rel (0) target = $region37
    $region36: #{_lambda_.1} parent=1 // pred_region
      _
    $region37: #{_lambda_.1} parent=1 // pred_fallthru
      _
    // Predicated region
    $region38: #{_lambda_.1} parent=1 // pred_check
      _
    $region39: #{_lambda_.1} parent=1 // pred_check_branch
      %68 = sbr.rel (0) target = $region41
    $region40: #{_lambda_.1} parent=1 // pred_region
      _
    $region41: #{_lambda_.1} parent=1 // pred_fallthru
      _
    // Predicated region
    $region42: #{_lambda_.1} parent=1 // pred_check
      _
    $region43: #{_lambda_.1} parent=1 // pred_check_branch
      %70 = sbr.rel (0) target = $region45
    $region44: #{_lambda_.1} parent=1 // pred_region
      _
    $region45: #{_lambda_.1} parent=1 // pred_fallthru
      _
    // Predicated region
    $region46: #{_lambda_.1} parent=1 // pred_check
      _
    $region47: #{_lambda_.1} parent=1 // pred_check_branch
      %72 = sbr.rel (0) target = $region49
    $region48: #{_lambda_.1} parent=1 // pred_region
      %73 = dma.done [#allocation4], 3072
    $region49: #{_lambda_.1} parent=1 // pred_fallthru
      _
    // Predicated region
    $region50: #{_lambda_.1} parent=1 // pred_check
      _
    $region51: #{_lambda_.1} parent=1 // pred_check_branch
      %75 = sbr.rel (0) target = $region53
    $region52: #{_lambda_.1} parent=1 // pred_region
      %76 = dma.done [#allocation7], 24576
    $region53: #{_lambda_.1} parent=1 // pred_fallthru
      _
    // Predicated region
    $region54: #{_lambda_.1} parent=1 // pred_check
      _
    $region55: #{_lambda_.1} parent=1 // pred_check_branch
      %78 = sbr.rel (0) target = $region57
    $region56: #{_lambda_.1} parent=1 // pred_region
      %79 = dma.done [#allocation7], 2048
    $region57: #{_lambda_.1} parent=1 // pred_fallthru
      _
    %v80 = vld [vmem:[%s2] sm:$0xf]
    %v81 = vld [vmem:[%s4] sm:$0x3]
    %v82 = vld [vmem:[%s0] sm:$0xff]
    %v83 = vld [vmem:[%s0 + $0x8] sm:$0xff]
    %v84 = vld [vmem:[#allocation3] sm:$0xff]
    %v85 = vld [vmem:[#allocation3 + $0x8] sm:$0xff]
    %v86 = vld [vmem:[#allocation3 + $0x10] sm:$0xff]
    %v87 = vld [vmem:[#allocation3 + $0x18] sm:$0xff]
    %v88 = vld [vmem:[#allocation3 + $0x20] sm:$0xff]
    %v89 = vld [vmem:[#allocation3 + $0x28] sm:$0xff]
    %v90 = vld [vmem:[#allocation3 + $0x30] sm:$0xff]
    %v91 = vld [vmem:[#allocation3 + $0x38] sm:$0xff]
    %v92 = vld [vmem:[#allocation3 + $0x40] sm:$0xff]
    %v93 = vld [vmem:[#allocation3 + $0x48] sm:$0xff]
    %v94 = vld [vmem:[#allocation3 + $0x50] sm:$0xff]
    %v95 = vld [vmem:[#allocation3 + $0x58] sm:$0xff]
    %v96 = vld [vmem:[#allocation3 + $0x60] sm:$0xff]
    %v97 = vld [vmem:[#allocation3 + $0x68] sm:$0xff]
    %v98 = vld [vmem:[#allocation3 + $0x70] sm:$0xff]
    %v99 = vld [vmem:[#allocation3 + $0x78] sm:$0xff]
    %v100 = vld [vmem:[#allocation3 + $0x80] sm:$0xff]
    %v101 = vld [vmem:[#allocation3 + $0x88] sm:$0xff]
    %v102 = vld [vmem:[#allocation3 + $0x90] sm:$0xff]
    %v103 = vld [vmem:[#allocation3 + $0x98] sm:$0xff]
    %v104 = vld [vmem:[#allocation3 + $0xa0] sm:$0x3]
    %v105 = vld [vmem:[#allocation3 + $0xa8] sm:$0x3]
    %v106 = vld [vmem:[#allocation3 + $0xb0] sm:$0x3]
    %v107 = vld [vmem:[#allocation3 + $0xb8] sm:$0x3]
    %vm108 = vcmask 343040
    %v110 = vsel %vm108, %v82, 0
    %v113 = vsel %vm108, %v83, 0
    %vm115 = vcmask 1041408
    %v117 = vsel %vm115, %v104, 0
    %v120 = vsel %vm115, %v105, 0
    %v123 = vsel %vm115, %v106, 0
    %v126 = vsel %vm115, %v107, 0
    %128 = vmatprep.subr.mxu0 %v85
    %129 = vmatpush1.msra.mxu0 %v84
    %130 = vmatprep.subr.mxu0 %v89
    %131 = vmatpush1.msra.mxu0 %v88
    %132 = vmatprep.subr.mxu0 %v93
    %133 = vmatpush1.msra.mxu0 %v92
    %134 = vmatprep.subr.mxu0 %v97
    %135 = vmatpush1.msra.mxu0 %v96
    %136 = vmatprep.subr.mxu0 %v101
    %137 = vmatpush1.msra.mxu0 %v100
    %138 = vmatprep.subr.mxu0 %v120
    %139 = vmatpush1.msra.mxu0 %v117
    %140 = vmatprep.subr.mxu0 0.0
    %141 = vmatpush1.msra.mxu0 0.0
    %142 = vmatprep.subr.mxu0 0.0
    %143 = vmatpush1.msra.mxu0 0.0
    %144 = vmatprep.subr.mxu0 0.0
    %145 = vmatpush1.msra.mxu0 0.0
    %146 = vmatprep.subr.mxu0 0.0
    %147 = vmatpush1.msra.mxu0 0.0
    %148 = vmatprep.subr.mxu0 0.0
    %149 = vmatpush1.msra.mxu0 0.0
    %150 = vmatprep.subr.mxu0 0.0
    %151 = vmatpush1.msra.mxu0 0.0
    %152 = vmatprep.subr.mxu0 0.0
    %153 = vmatpush1.msra.mxu0 0.0
    %154 = vmatprep.subr.mxu0 0.0
    %155 = vmatpush1.msra.mxu0 0.0
    %156 = vmatprep.subr.mxu0 0.0
    %157 = vmatpush1.msra.mxu0 0.0
    %158 = vmatprep.subr.mxu0 0.0
    %159 = vmatpush1.msra.mxu0 0.0
    %160 = vmatprep.subr.mxu0 0.0
    %161 = vmatpush1.msra.mxu0 0.0
    %162 = vmatprep.subr.mxu0 0.0
    %163 = vmatpush1.msra.mxu0 0.0
    %164 = vmatprep.subr.mxu0 0.0
    %165 = vmatpush1.msra.mxu0 0.0
    %166 = vmatprep.subr.mxu0 0.0
    %167 = vmatpush1.msra.mxu0 0.0
    %168 = vmatprep.subr.mxu0 0.0
    %169 = vmatpush1.msra.mxu0 0.0
    %170 = vmatprep.subr.mxu0 0.0
    %171 = vmatpush1.msra.mxu0 0.0
    %172 = vmatprep.subr.mxu0 0.0
    %173 = vmatpush1.msra.mxu0 0.0
    %174 = vmatprep.subr.mxu0 0.0
    %175 = vmatpush1.msra.mxu0 0.0
    %176 = vmatprep.subr.mxu0 0.0
    %177 = vmatpush1.msra.mxu0 0.0
    %178 = vmatprep.subr.mxu0 0.0
    %179 = vmatpush1.msra.mxu0 0.0
    %180 = vmatprep.subr.mxu0 0.0
    %181 = vmatpush1.msra.mxu0 0.0
    %182 = vmatprep.subr.mxu0 0.0
    %183 = vmatpush1.msra.mxu0 0.0
    %184 = vmatprep.subr.mxu0 0.0
    %185 = vmatpush1.msra.mxu0 0.0
    %186 = vmatprep.subr.mxu0 0.0
    %187 = vmatpush1.msra.mxu0 0.0
    %188 = vmatprep.subr.mxu0 0.0
    %189 = vmatpush1.msra.mxu0 0.0
    %190 = vmatprep.subr.mxu0 0.0
    %191 = vmatpush1.msra.mxu0 0.0
    %192 = vmatprep.mubr.f32.mxu0 0.0
    %193 = vmatmul.mubr.f32.gmra.mrb[0].mxu0 %v110
    %v194 = vpop.f32.mrb[0].mxu0
    %v195 = vadd.f32 0.0, %v194
    %v196 = vpop.f32.mrb[0].mxu0
    %v197 = vadd.f32 0.0, %v196
    %198 = vmatprep.mubr.f32.mxu0 0.0
    %199 = vmatmul.mubr.f32.gmra.mrb[0].mxu0 %v113
    %v200 = vpop.f32.mrb[0].mxu0
    %v201 = vadd.f32 0.0, %v200
    %v202 = vpop.f32.mrb[0].mxu0
    %v203 = vadd.f32 0.0, %v202
    %204 = vdwg.mxu0
    %205 = vmatprep.subr.mxu0 %v87
    %206 = vmatpush1.msra.mxu0 %v86
    %207 = vmatprep.subr.mxu0 %v91
    %208 = vmatpush1.msra.mxu0 %v90
    %209 = vmatprep.subr.mxu0 %v95
    %210 = vmatpush1.msra.mxu0 %v94
    %211 = vmatprep.subr.mxu0 %v99
    %212 = vmatpush1.msra.mxu0 %v98
    %213 = vmatprep.subr.mxu0 %v103
    %214 = vmatpush1.msra.mxu0 %v102
    %215 = vmatprep.subr.mxu0 %v126
    %216 = vmatpush1.msra.mxu0 %v123
    %217 = vmatprep.subr.mxu0 0.0
    %218 = vmatpush1.msra.mxu0 0.0
    %219 = vmatprep.subr.mxu0 0.0
    %220 = vmatpush1.msra.mxu0 0.0
    %221 = vmatprep.subr.mxu0 0.0
    %222 = vmatpush1.msra.mxu0 0.0
    %223 = vmatprep.subr.mxu0 0.0
    %224 = vmatpush1.msra.mxu0 0.0
    %225 = vmatprep.subr.mxu0 0.0
    %226 = vmatpush1.msra.mxu0 0.0
    %227 = vmatprep.subr.mxu0 0.0
    %228 = vmatpush1.msra.mxu0 0.0
    %229 = vmatprep.subr.mxu0 0.0
    %230 = vmatpush1.msra.mxu0 0.0
    %231 = vmatprep.subr.mxu0 0.0
    %232 = vmatpush1.msra.mxu0 0.0
    %233 = vmatprep.subr.mxu0 0.0
    %234 = vmatpush1.msra.mxu0 0.0
    %235 = vmatprep.subr.mxu0 0.0
    %236 = vmatpush1.msra.mxu0 0.0
    %237 = vmatprep.subr.mxu0 0.0
    %238 = vmatpush1.msra.mxu0 0.0
    %239 = vmatprep.subr.mxu0 0.0
    %240 = vmatpush1.msra.mxu0 0.0
    %241 = vmatprep.subr.mxu0 0.0
    %242 = vmatpush1.msra.mxu0 0.0
    %243 = vmatprep.subr.mxu0 0.0
    %244 = vmatpush1.msra.mxu0 0.0
    %245 = vmatprep.subr.mxu0 0.0
    %246 = vmatpush1.msra.mxu0 0.0
    %247 = vmatprep.subr.mxu0 0.0
    %248 = vmatpush1.msra.mxu0 0.0
    %249 = vmatprep.subr.mxu0 0.0
    %250 = vmatpush1.msra.mxu0 0.0
    %251 = vmatprep.subr.mxu0 0.0
    %252 = vmatpush1.msra.mxu0 0.0
    %253 = vmatprep.subr.mxu0 0.0
    %254 = vmatpush1.msra.mxu0 0.0
    %255 = vmatprep.subr.mxu0 0.0
    %256 = vmatpush1.msra.mxu0 0.0
    %257 = vmatprep.subr.mxu0 0.0
    %258 = vmatpush1.msra.mxu0 0.0
    %259 = vmatprep.subr.mxu0 0.0
    %260 = vmatpush1.msra.mxu0 0.0
    %261 = vmatprep.subr.mxu0 0.0
    %262 = vmatpush1.msra.mxu0 0.0
    %263 = vmatprep.subr.mxu0 0.0
    %264 = vmatpush1.msra.mxu0 0.0
    %265 = vmatprep.subr.mxu0 0.0
    %266 = vmatpush1.msra.mxu0 0.0
    %267 = vmatprep.subr.mxu0 0.0
    %268 = vmatpush1.msra.mxu0 0.0
    %269 = vmatprep.mubr.f32.mxu0 0.0
    %270 = vmatmul.mubr.f32.gmra.mrb[0].mxu0 %v110
    %v271 = vpop.f32.mrb[0].mxu0
    %v272 = vadd.f32 0.0, %v271
    %v273 = vpop.f32.mrb[0].mxu0
    %v274 = vadd.f32 0.0, %v273
    %275 = vmatprep.mubr.f32.mxu0 0.0
    %276 = vmatmul.mubr.f32.gmra.mrb[0].mxu0 %v113
    %v277 = vpop.f32.mrb[0].mxu0
    %v278 = vadd.f32 0.0, %v277
    %v279 = vpop.f32.mrb[0].mxu0
    %v280 = vadd.f32 0.0, %v279
    %281 = vdwg.mxu0
    %v282 = vmax.f32 %v195, %v201
    %v283 = vmax.f32 %v197, %v203
    %v284 = vmax.f32 %v272, %v278
    %v285 = vmax.f32 %v274, %v280
    %v287 = vlaneseq
    %v288 = vshrl.u32 %v287, 7
    %v289 = vsub.s32 0, %v288
    %v290 = vrot.slane %v80, %v289
    %v291 = vlaneseq
    %v292 = vshrl.u32 %v291, 7
    %v293 = vsub.s32 1, %v292
    %v294 = vrot.slane %v80, %v293
    %v295 = vlaneseq
    %v296 = vshrl.u32 %v295, 7
    %v297 = vsub.s32 2, %v296
    %v298 = vrot.slane %v80, %v297
    %v299 = vlaneseq
    %v300 = vshrl.u32 %v299, 7
    %v301 = vsub.s32 3, %v300
    %v302 = vrot.slane %v80, %v301
    %v307 = vadd.f32 %v282, %v290
    %v308 = vadd.f32 %v283, %v294
    %v309 = vadd.f32 %v284, %v298
    %v310 = vadd.f32 %v285, %v302
    %v311 = vmax.f32 %v307, %v309
    %v312 = vmax.f32 %v308, %v310
    %v313 = vmax.f32 %v311, 0.0
    %v314 = vmax.f32 %v312, 0.0
    %v315 = vld [vmem:[#allocation6] sm:$0xff]
    %v316 = vld [vmem:[#allocation6 + $0x8] sm:$0xff]
    %v317 = vld [vmem:[#allocation6 + $0x10] sm:$0xff]
    %v318 = vld [vmem:[#allocation6 + $0x18] sm:$0xff]
    %v319 = vld [vmem:[#allocation6 + $0x20] sm:$0xff]
    %v320 = vld [vmem:[#allocation6 + $0x28] sm:$0xff]
    %v321 = vld [vmem:[#allocation6 + $0x30] sm:$0xff]
    %v322 = vld [vmem:[#allocation6 + $0x38] sm:$0xff]
    %v323 = vld [vmem:[#allocation6 + $0x40] sm:$0xff]
    %v324 = vld [vmem:[#allocation6 + $0x48] sm:$0xff]
    %v325 = vld [vmem:[#allocation6 + $0x50] sm:$0xff]
    %v326 = vld [vmem:[#allocation6 + $0x58] sm:$0xff]
    %v327 = vld [vmem:[#allocation6 + $0x60] sm:$0xff]
    %v328 = vld [vmem:[#allocation6 + $0x68] sm:$0xff]
    %v329 = vld [vmem:[#allocation6 + $0x70] sm:$0xff]
    %v330 = vld [vmem:[#allocation6 + $0x78] sm:$0xff]
    %v331 = vld [vmem:[#allocation6 + $0x80] sm:$0xff]
    %v332 = vld [vmem:[#allocation6 + $0x88] sm:$0xff]
    %v333 = vld [vmem:[#allocation6 + $0x90] sm:$0xff]
    %v334 = vld [vmem:[#allocation6 + $0x98] sm:$0xff]
    %v335 = vld [vmem:[#allocation6 + $0xa0] sm:$0xff]
    %v336 = vld [vmem:[#allocation6 + $0xa8] sm:$0xff]
    %v337 = vld [vmem:[#allocation6 + $0xb0] sm:$0xff]
    %v338 = vld [vmem:[#allocation6 + $0xb8] sm:$0xff]
    %v339 = vld [vmem:[#allocation6 + $0xc0] sm:$0xff]
    %v340 = vld [vmem:[#allocation6 + $0xc8] sm:$0xff]
    %v341 = vld [vmem:[#allocation6 + $0xd0] sm:$0xff]
    %v342 = vld [vmem:[#allocation6 + $0xd8] sm:$0xff]
    %v343 = vld [vmem:[#allocation6 + $0xe0] sm:$0xff]
    %v344 = vld [vmem:[#allocation6 + $0xe8] sm:$0xff]
    %v345 = vld [vmem:[#allocation6 + $0xf0] sm:$0xff]
    %v346 = vld [vmem:[#allocation6 + $0xf8] sm:$0xff]
    %v347 = vld [vmem:[#allocation6 + $0x100] sm:$0xff]
    %v348 = vld [vmem:[#allocation6 + $0x108] sm:$0xff]
    %v349 = vld [vmem:[#allocation6 + $0x110] sm:$0xff]
    %v350 = vld [vmem:[#allocation6 + $0x118] sm:$0xff]
    %v351 = vld [vmem:[#allocation6 + $0x120] sm:$0xff]
    %v352 = vld [vmem:[#allocation6 + $0x128] sm:$0xff]
    %v353 = vld [vmem:[#allocation6 + $0x130] sm:$0xff]
    %v354 = vld [vmem:[#allocation6 + $0x138] sm:$0xff]
    %v355 = vld [vmem:[#allocation6 + $0x140] sm:$0xff]
    %v356 = vld [vmem:[#allocation6 + $0x148] sm:$0xff]
    %v357 = vld [vmem:[#allocation6 + $0x150] sm:$0xff]
    %v358 = vld [vmem:[#allocation6 + $0x158] sm:$0xff]
    %v359 = vld [vmem:[#allocation6 + $0x160] sm:$0xff]
    %v360 = vld [vmem:[#allocation6 + $0x168] sm:$0xff]
    %v361 = vld [vmem:[#allocation6 + $0x170] sm:$0xff]
    %v362 = vld [vmem:[#allocation6 + $0x178] sm:$0xff]
    %v363 = vld [vmem:[#allocation6 + $0x180] sm:$0xff]
    %v364 = vld [vmem:[#allocation6 + $0x188] sm:$0xff]
    %v365 = vld [vmem:[#allocation6 + $0x190] sm:$0xff]
    %v366 = vld [vmem:[#allocation6 + $0x198] sm:$0xff]
    %v367 = vld [vmem:[#allocation6 + $0x1a0] sm:$0xff]
    %v368 = vld [vmem:[#allocation6 + $0x1a8] sm:$0xff]
    %v369 = vld [vmem:[#allocation6 + $0x1b0] sm:$0xff]
    %v370 = vld [vmem:[#allocation6 + $0x1b8] sm:$0xff]
    %v371 = vld [vmem:[#allocation6 + $0x1c0] sm:$0xff]
    %v372 = vld [vmem:[#allocation6 + $0x1c8] sm:$0xff]
    %v373 = vld [vmem:[#allocation6 + $0x1d0] sm:$0xff]
    %v374 = vld [vmem:[#allocation6 + $0x1d8] sm:$0xff]
    %v375 = vld [vmem:[#allocation6 + $0x1e0] sm:$0xff]
    %v376 = vld [vmem:[#allocation6 + $0x1e8] sm:$0xff]
    %v377 = vld [vmem:[#allocation6 + $0x1f0] sm:$0xff]
    %v378 = vld [vmem:[#allocation6 + $0x1f8] sm:$0xff]
    %s379 = scalar_lea.vmem [#allocation6], 512
    %v380 = vld [vmem:[%s379] sm:$0xff]
    %v381 = vld [vmem:[%s379 + $0x8] sm:$0xff]
    %v382 = vld [vmem:[%s379 + $0x10] sm:$0xff]
    %v383 = vld [vmem:[%s379 + $0x18] sm:$0xff]
    %v384 = vld [vmem:[%s379 + $0x20] sm:$0xff]
    %v385 = vld [vmem:[%s379 + $0x28] sm:$0xff]
    %v386 = vld [vmem:[%s379 + $0x30] sm:$0xff]
    %v387 = vld [vmem:[%s379 + $0x38] sm:$0xff]
    %v388 = vld [vmem:[%s379 + $0x40] sm:$0xff]
    %v389 = vld [vmem:[%s379 + $0x48] sm:$0xff]
    %v390 = vld [vmem:[%s379 + $0x50] sm:$0xff]
    %v391 = vld [vmem:[%s379 + $0x58] sm:$0xff]
    %v392 = vld [vmem:[%s379 + $0x60] sm:$0xff]
    %v393 = vld [vmem:[%s379 + $0x68] sm:$0xff]
    %v394 = vld [vmem:[%s379 + $0x70] sm:$0xff]
    %v395 = vld [vmem:[%s379 + $0x78] sm:$0xff]
    %v396 = vld [vmem:[%s379 + $0x80] sm:$0xff]
    %v397 = vld [vmem:[%s379 + $0x88] sm:$0xff]
    %v398 = vld [vmem:[%s379 + $0x90] sm:$0xff]
    %v399 = vld [vmem:[%s379 + $0x98] sm:$0xff]
    %v400 = vld [vmem:[%s379 + $0xa0] sm:$0xff]
    %v401 = vld [vmem:[%s379 + $0xa8] sm:$0xff]
    %v402 = vld [vmem:[%s379 + $0xb0] sm:$0xff]
    %v403 = vld [vmem:[%s379 + $0xb8] sm:$0xff]
    %v404 = vld [vmem:[%s379 + $0xc0] sm:$0xff]
    %v405 = vld [vmem:[%s379 + $0xc8] sm:$0xff]
    %v406 = vld [vmem:[%s379 + $0xd0] sm:$0xff]
    %v407 = vld [vmem:[%s379 + $0xd8] sm:$0xff]
    %v408 = vld [vmem:[%s379 + $0xe0] sm:$0xff]
    %v409 = vld [vmem:[%s379 + $0xe8] sm:$0xff]
    %v410 = vld [vmem:[%s379 + $0xf0] sm:$0xff]
    %v411 = vld [vmem:[%s379 + $0xf8] sm:$0xff]
    %v412 = vld [vmem:[%s379 + $0x100] sm:$0xff]
    %v413 = vld [vmem:[%s379 + $0x108] sm:$0xff]
    %v414 = vld [vmem:[%s379 + $0x110] sm:$0xff]
    %v415 = vld [vmem:[%s379 + $0x118] sm:$0xff]
    %v416 = vld [vmem:[%s379 + $0x120] sm:$0xff]
    %v417 = vld [vmem:[%s379 + $0x128] sm:$0xff]
    %v418 = vld [vmem:[%s379 + $0x130] sm:$0xff]
    %v419 = vld [vmem:[%s379 + $0x138] sm:$0xff]
    %v420 = vld [vmem:[%s379 + $0x140] sm:$0xff]
    %v421 = vld [vmem:[%s379 + $0x148] sm:$0xff]
    %v422 = vld [vmem:[%s379 + $0x150] sm:$0xff]
    %v423 = vld [vmem:[%s379 + $0x158] sm:$0xff]
    %v424 = vld [vmem:[%s379 + $0x160] sm:$0xff]
    %v425 = vld [vmem:[%s379 + $0x168] sm:$0xff]
    %v426 = vld [vmem:[%s379 + $0x170] sm:$0xff]
    %v427 = vld [vmem:[%s379 + $0x178] sm:$0xff]
    %v428 = vld [vmem:[%s379 + $0x180] sm:$0xff]
    %v429 = vld [vmem:[%s379 + $0x188] sm:$0xff]
    %v430 = vld [vmem:[%s379 + $0x190] sm:$0xff]
    %v431 = vld [vmem:[%s379 + $0x198] sm:$0xff]
    %v432 = vld [vmem:[%s379 + $0x1a0] sm:$0xff]
    %v433 = vld [vmem:[%s379 + $0x1a8] sm:$0xff]
    %v434 = vld [vmem:[%s379 + $0x1b0] sm:$0xff]
    %v435 = vld [vmem:[%s379 + $0x1b8] sm:$0xff]
    %v436 = vld [vmem:[%s379 + $0x1c0] sm:$0xff]
    %v437 = vld [vmem:[%s379 + $0x1c8] sm:$0xff]
    %v438 = vld [vmem:[%s379 + $0x1d0] sm:$0xff]
    %v439 = vld [vmem:[%s379 + $0x1d8] sm:$0xff]
    %v440 = vld [vmem:[%s379 + $0x1e0] sm:$0xff]
    %v441 = vld [vmem:[%s379 + $0x1e8] sm:$0xff]
    %v442 = vld [vmem:[%s379 + $0x1f0] sm:$0xff]
    %v443 = vld [vmem:[%s379 + $0x1f8] sm:$0xff]
    %v446 = vrot.slane %v313, 1
    %v447 = vrot.slane %v314, 1
    %450 = vmatprep.subr.mxu0 %v381
    %451 = vmatpush1.msra.mxu0 %v380
    %452 = vmatprep.subr.mxu0 %v383
    %453 = vmatpush1.msra.mxu0 %v382
    %454 = vmatprep.subr.mxu0 %v385
    %455 = vmatpush1.msra.mxu0 %v384
    %456 = vmatprep.subr.mxu0 %v387
    %457 = vmatpush1.msra.mxu0 %v386
    %458 = vmatprep.subr.mxu0 %v389
    %459 = vmatpush1.msra.mxu0 %v388
    %460 = vmatprep.subr.mxu0 %v391
    %461 = vmatpush1.msra.mxu0 %v390
    %462 = vmatprep.subr.mxu0 %v393
    %463 = vmatpush1.msra.mxu0 %v392
    %464 = vmatprep.subr.mxu0 %v395
    %465 = vmatpush1.msra.mxu0 %v394
    %466 = vmatprep.subr.mxu0 %v397
    %467 = vmatpush1.msra.mxu0 %v396
    %468 = vmatprep.subr.mxu0 %v399
    %469 = vmatpush1.msra.mxu0 %v398
    %470 = vmatprep.subr.mxu0 %v401
    %471 = vmatpush1.msra.mxu0 %v400
    %472 = vmatprep.subr.mxu0 %v403
    %473 = vmatpush1.msra.mxu0 %v402
    %474 = vmatprep.subr.mxu0 %v405
    %475 = vmatpush1.msra.mxu0 %v404
    %476 = vmatprep.subr.mxu0 %v407
    %477 = vmatpush1.msra.mxu0 %v406
    %478 = vmatprep.subr.mxu0 %v409
    %479 = vmatpush1.msra.mxu0 %v408
    %480 = vmatprep.subr.mxu0 %v411
    %481 = vmatpush1.msra.mxu0 %v410
    %482 = vmatprep.subr.mxu0 %v413
    %483 = vmatpush1.msra.mxu0 %v412
    %484 = vmatprep.subr.mxu0 %v415
    %485 = vmatpush1.msra.mxu0 %v414
    %486 = vmatprep.subr.mxu0 %v417
    %487 = vmatpush1.msra.mxu0 %v416
    %488 = vmatprep.subr.mxu0 %v419
    %489 = vmatpush1.msra.mxu0 %v418
    %490 = vmatprep.subr.mxu0 %v421
    %491 = vmatpush1.msra.mxu0 %v420
    %492 = vmatprep.subr.mxu0 %v423
    %493 = vmatpush1.msra.mxu0 %v422
    %494 = vmatprep.subr.mxu0 %v425
    %495 = vmatpush1.msra.mxu0 %v424
    %496 = vmatprep.subr.mxu0 %v427
    %497 = vmatpush1.msra.mxu0 %v426
    %498 = vmatprep.subr.mxu0 %v429
    %499 = vmatpush1.msra.mxu0 %v428
    %500 = vmatprep.subr.mxu0 %v431
    %501 = vmatpush1.msra.mxu0 %v430
    %502 = vmatprep.subr.mxu0 %v433
    %503 = vmatpush1.msra.mxu0 %v432
    %504 = vmatprep.subr.mxu0 %v435
    %505 = vmatpush1.msra.mxu0 %v434
    %506 = vmatprep.subr.mxu0 %v437
    %507 = vmatpush1.msra.mxu0 %v436
    %508 = vmatprep.subr.mxu0 %v439
    %509 = vmatpush1.msra.mxu0 %v438
    %510 = vmatprep.subr.mxu0 %v441
    %511 = vmatpush1.msra.mxu0 %v440
    %512 = vmatprep.subr.mxu0 %v443
    %513 = vmatpush1.msra.mxu0 %v442
    %514 = vmatprep.mubr.f32.mxu0 %v447
    %515 = vmatmul.mubr.f32.gmra.mrb[0].mxu0 %v446
    %v516 = vpop.f32.mrb[0].mxu0
    %v517 = vadd.f32 0.0, %v516
    %v518 = vpop.f32.mrb[0].mxu0
    %v519 = vadd.f32 0.0, %v518
    %520 = vdwg.mxu0
    %521 = vmatprep.subr.mxu0 %v316
    %522 = vmatpush1.msra.mxu0 %v315
    %523 = vmatprep.subr.mxu0 %v318
    %524 = vmatpush1.msra.mxu0 %v317
    %525 = vmatprep.subr.mxu0 %v320
    %526 = vmatpush1.msra.mxu0 %v319
    %527 = vmatprep.subr.mxu0 %v322
    %528 = vmatpush1.msra.mxu0 %v321
    %529 = vmatprep.subr.mxu0 %v324
    %530 = vmatpush1.msra.mxu0 %v323
    %531 = vmatprep.subr.mxu0 %v326
    %532 = vmatpush1.msra.mxu0 %v325
    %533 = vmatprep.subr.mxu0 %v328
    %534 = vmatpush1.msra.mxu0 %v327
    %535 = vmatprep.subr.mxu0 %v330
    %536 = vmatpush1.msra.mxu0 %v329
    %537 = vmatprep.subr.mxu0 %v332
    %538 = vmatpush1.msra.mxu0 %v331
    %539 = vmatprep.subr.mxu0 %v334
    %540 = vmatpush1.msra.mxu0 %v333
    %541 = vmatprep.subr.mxu0 %v336
    %542 = vmatpush1.msra.mxu0 %v335
    %543 = vmatprep.subr.mxu0 %v338
    %544 = vmatpush1.msra.mxu0 %v337
    %545 = vmatprep.subr.mxu0 %v340
    %546 = vmatpush1.msra.mxu0 %v339
    %547 = vmatprep.subr.mxu0 %v342
    %548 = vmatpush1.msra.mxu0 %v341
    %549 = vmatprep.subr.mxu0 %v344
    %550 = vmatpush1.msra.mxu0 %v343
    %551 = vmatprep.subr.mxu0 %v346
    %552 = vmatpush1.msra.mxu0 %v345
    %553 = vmatprep.subr.mxu0 %v348
    %554 = vmatpush1.msra.mxu0 %v347
    %555 = vmatprep.subr.mxu0 %v350
    %556 = vmatpush1.msra.mxu0 %v349
    %557 = vmatprep.subr.mxu0 %v352
    %558 = vmatpush1.msra.mxu0 %v351
    %559 = vmatprep.subr.mxu0 %v354
    %560 = vmatpush1.msra.mxu0 %v353
    %561 = vmatprep.subr.mxu0 %v356
    %562 = vmatpush1.msra.mxu0 %v355
    %563 = vmatprep.subr.mxu0 %v358
    %564 = vmatpush1.msra.mxu0 %v357
    %565 = vmatprep.subr.mxu0 %v360
    %566 = vmatpush1.msra.mxu0 %v359
    %567 = vmatprep.subr.mxu0 %v362
    %568 = vmatpush1.msra.mxu0 %v361
    %569 = vmatprep.subr.mxu0 %v364
    %570 = vmatpush1.msra.mxu0 %v363
    %571 = vmatprep.subr.mxu0 %v366
    %572 = vmatpush1.msra.mxu0 %v365
    %573 = vmatprep.subr.mxu0 %v368
    %574 = vmatpush1.msra.mxu0 %v367
    %575 = vmatprep.subr.mxu0 %v370
    %576 = vmatpush1.msra.mxu0 %v369
    %577 = vmatprep.subr.mxu0 %v372
    %578 = vmatpush1.msra.mxu0 %v371
    %579 = vmatprep.subr.mxu0 %v374
    %580 = vmatpush1.msra.mxu0 %v373
    %581 = vmatprep.subr.mxu0 %v376
    %582 = vmatpush1.msra.mxu0 %v375
    %583 = vmatprep.subr.mxu0 %v378
    %584 = vmatpush1.msra.mxu0 %v377
    %585 = vmatprep.mubr.f32.mxu0 %v314
    %586 = vmatmul.mubr.f32.gmra.mrb[0].mxu0 %v313
    %v587 = vpop.f32.mrb[0].mxu0
    %v588 = vadd.f32 %v517, %v587
    %v589 = vpop.f32.mrb[0].mxu0
    %v590 = vadd.f32 %v519, %v589
    %591 = vdwg.mxu0
    %s592 = scalar_lea.vmem [#allocation6], 1024
    %v593 = vld [vmem:[%s592] sm:$0xff]
    %v594 = vld [vmem:[%s592 + $0x8] sm:$0xff]
    %v595 = vld [vmem:[%s592 + $0x10] sm:$0xff]
    %v596 = vld [vmem:[%s592 + $0x18] sm:$0xff]
    %v597 = vld [vmem:[%s592 + $0x20] sm:$0xff]
    %v598 = vld [vmem:[%s592 + $0x28] sm:$0xff]
    %v599 = vld [vmem:[%s592 + $0x30] sm:$0xff]
    %v600 = vld [vmem:[%s592 + $0x38] sm:$0xff]
    %v601 = vld [vmem:[%s592 + $0x40] sm:$0xff]
    %v602 = vld [vmem:[%s592 + $0x48] sm:$0xff]
    %v603 = vld [vmem:[%s592 + $0x50] sm:$0xff]
    %v604 = vld [vmem:[%s592 + $0x58] sm:$0xff]
    %v605 = vld [vmem:[%s592 + $0x60] sm:$0xff]
    %v606 = vld [vmem:[%s592 + $0x68] sm:$0xff]
    %v607 = vld [vmem:[%s592 + $0x70] sm:$0xff]
    %v608 = vld [vmem:[%s592 + $0x78] sm:$0xff]
    %v609 = vld [vmem:[%s592 + $0x80] sm:$0xff]
    %v610 = vld [vmem:[%s592 + $0x88] sm:$0xff]
    %v611 = vld [vmem:[%s592 + $0x90] sm:$0xff]
    %v612 = vld [vmem:[%s592 + $0x98] sm:$0xff]
    %v613 = vld [vmem:[%s592 + $0xa0] sm:$0xff]
    %v614 = vld [vmem:[%s592 + $0xa8] sm:$0xff]
    %v615 = vld [vmem:[%s592 + $0xb0] sm:$0xff]
    %v616 = vld [vmem:[%s592 + $0xb8] sm:$0xff]
    %v617 = vld [vmem:[%s592 + $0xc0] sm:$0xff]
    %v618 = vld [vmem:[%s592 + $0xc8] sm:$0xff]
    %v619 = vld [vmem:[%s592 + $0xd0] sm:$0xff]
    %v620 = vld [vmem:[%s592 + $0xd8] sm:$0xff]
    %v621 = vld [vmem:[%s592 + $0xe0] sm:$0xff]
    %v622 = vld [vmem:[%s592 + $0xe8] sm:$0xff]
    %v623 = vld [vmem:[%s592 + $0xf0] sm:$0xff]
    %v624 = vld [vmem:[%s592 + $0xf8] sm:$0xff]
    %v625 = vld [vmem:[%s592 + $0x100] sm:$0xff]
    %v626 = vld [vmem:[%s592 + $0x108] sm:$0xff]
    %v627 = vld [vmem:[%s592 + $0x110] sm:$0xff]
    %v628 = vld [vmem:[%s592 + $0x118] sm:$0xff]
    %v629 = vld [vmem:[%s592 + $0x120] sm:$0xff]
    %v630 = vld [vmem:[%s592 + $0x128] sm:$0xff]
    %v631 = vld [vmem:[%s592 + $0x130] sm:$0xff]
    %v632 = vld [vmem:[%s592 + $0x138] sm:$0xff]
    %v633 = vld [vmem:[%s592 + $0x140] sm:$0xff]
    %v634 = vld [vmem:[%s592 + $0x148] sm:$0xff]
    %v635 = vld [vmem:[%s592 + $0x150] sm:$0xff]
    %v636 = vld [vmem:[%s592 + $0x158] sm:$0xff]
    %v637 = vld [vmem:[%s592 + $0x160] sm:$0xff]
    %v638 = vld [vmem:[%s592 + $0x168] sm:$0xff]
    %v639 = vld [vmem:[%s592 + $0x170] sm:$0xff]
    %v640 = vld [vmem:[%s592 + $0x178] sm:$0xff]
    %v641 = vld [vmem:[%s592 + $0x180] sm:$0xff]
    %v642 = vld [vmem:[%s592 + $0x188] sm:$0xff]
    %v643 = vld [vmem:[%s592 + $0x190] sm:$0xff]
    %v644 = vld [vmem:[%s592 + $0x198] sm:$0xff]
    %v645 = vld [vmem:[%s592 + $0x1a0] sm:$0xff]
    %v646 = vld [vmem:[%s592 + $0x1a8] sm:$0xff]
    %v647 = vld [vmem:[%s592 + $0x1b0] sm:$0xff]
    %v648 = vld [vmem:[%s592 + $0x1b8] sm:$0xff]
    %v649 = vld [vmem:[%s592 + $0x1c0] sm:$0xff]
    %v650 = vld [vmem:[%s592 + $0x1c8] sm:$0xff]
    %v651 = vld [vmem:[%s592 + $0x1d0] sm:$0xff]
    %v652 = vld [vmem:[%s592 + $0x1d8] sm:$0xff]
    %v653 = vld [vmem:[%s592 + $0x1e0] sm:$0xff]
    %v654 = vld [vmem:[%s592 + $0x1e8] sm:$0xff]
    %v655 = vld [vmem:[%s592 + $0x1f0] sm:$0xff]
    %v656 = vld [vmem:[%s592 + $0x1f8] sm:$0xff]
    %v657 = vrot.slane %v313, 2
    %v658 = vrot.slane %v314, 2
    %661 = vmatprep.subr.mxu0 %v594
    %662 = vmatpush1.msra.mxu0 %v593
    %663 = vmatprep.subr.mxu0 %v596
    %664 = vmatpush1.msra.mxu0 %v595
    %665 = vmatprep.subr.mxu0 %v598
    %666 = vmatpush1.msra.mxu0 %v597
    %667 = vmatprep.subr.mxu0 %v600
    %668 = vmatpush1.msra.mxu0 %v599
    %669 = vmatprep.subr.mxu0 %v602
    %670 = vmatpush1.msra.mxu0 %v601
    %671 = vmatprep.subr.mxu0 %v604
    %672 = vmatpush1.msra.mxu0 %v603
    %673 = vmatprep.subr.mxu0 %v606
    %674 = vmatpush1.msra.mxu0 %v605
    %675 = vmatprep.subr.mxu0 %v608
    %676 = vmatpush1.msra.mxu0 %v607
    %677 = vmatprep.subr.mxu0 %v610
    %678 = vmatpush1.msra.mxu0 %v609
    %679 = vmatprep.subr.mxu0 %v612
    %680 = vmatpush1.msra.mxu0 %v611
    %681 = vmatprep.subr.mxu0 %v614
    %682 = vmatpush1.msra.mxu0 %v613
    %683 = vmatprep.subr.mxu0 %v616
    %684 = vmatpush1.msra.mxu0 %v615
    %685 = vmatprep.subr.mxu0 %v618
    %686 = vmatpush1.msra.mxu0 %v617
    %687 = vmatprep.subr.mxu0 %v620
    %688 = vmatpush1.msra.mxu0 %v619
    %689 = vmatprep.subr.mxu0 %v622
    %690 = vmatpush1.msra.mxu0 %v621
    %691 = vmatprep.subr.mxu0 %v624
    %692 = vmatpush1.msra.mxu0 %v623
    %693 = vmatprep.subr.mxu0 %v626
    %694 = vmatpush1.msra.mxu0 %v625
    %695 = vmatprep.subr.mxu0 %v628
    %696 = vmatpush1.msra.mxu0 %v627
    %697 = vmatprep.subr.mxu0 %v630
    %698 = vmatpush1.msra.mxu0 %v629
    %699 = vmatprep.subr.mxu0 %v632
    %700 = vmatpush1.msra.mxu0 %v631
    %701 = vmatprep.subr.mxu0 %v634
    %702 = vmatpush1.msra.mxu0 %v633
    %703 = vmatprep.subr.mxu0 %v636
    %704 = vmatpush1.msra.mxu0 %v635
    %705 = vmatprep.subr.mxu0 %v638
    %706 = vmatpush1.msra.mxu0 %v637
    %707 = vmatprep.subr.mxu0 %v640
    %708 = vmatpush1.msra.mxu0 %v639
    %709 = vmatprep.subr.mxu0 %v642
    %710 = vmatpush1.msra.mxu0 %v641
    %711 = vmatprep.subr.mxu0 %v644
    %712 = vmatpush1.msra.mxu0 %v643
    %713 = vmatprep.subr.mxu0 %v646
    %714 = vmatpush1.msra.mxu0 %v645
    %715 = vmatprep.subr.mxu0 %v648
    %716 = vmatpush1.msra.mxu0 %v647
    %717 = vmatprep.subr.mxu0 %v650
    %718 = vmatpush1.msra.mxu0 %v649
    %719 = vmatprep.subr.mxu0 %v652
    %720 = vmatpush1.msra.mxu0 %v651
    %721 = vmatprep.subr.mxu0 %v654
    %722 = vmatpush1.msra.mxu0 %v653
    %723 = vmatprep.subr.mxu0 %v656
    %724 = vmatpush1.msra.mxu0 %v655
    %725 = vmatprep.mubr.f32.mxu0 %v658
    %726 = vmatmul.mubr.f32.gmra.mrb[0].mxu0 %v657
    %v727 = vpop.f32.mrb[0].mxu0
    %v728 = vadd.f32 0.0, %v727
    %v729 = vpop.f32.mrb[0].mxu0
    %v730 = vadd.f32 0.0, %v729
    %731 = vdwg.mxu0
    %v732 = vadd.f32 %v588, %v728
    %v733 = vadd.f32 %v590, %v730
    %v735 = vlaneseq
    %v736 = vshrl.u32 %v735, 7
    %v737 = vsub.s32 0, %v736
    %v738 = vrot.slane %v81, %v737
    %v739 = vlaneseq
    %v740 = vshrl.u32 %v739, 7
    %v741 = vsub.s32 1, %v740
    %v742 = vrot.slane %v81, %v741
    %v745 = vadd.f32 %v732, %v738
    %v746 = vadd.f32 %v733, %v742
    %v747 = vmax.f32 %v745, %v746
    %v749 = vrot.slane %v747, 1
    %v751 = vmax.f32 %v747, %v749
    %v752 = vmax.f32 %v751, 0.0
    %753 = vst [vmem:[#allocation2] sm:$0x1] %v752
    %v756 = vunpack.c.l.s4 1983009808
    %v757 = vunpack.c.0.s8 %v756
    %v758 = vlaneseq
    %v759 = vshrl.u32 %v758, 7
    %v760 = vsub.s32 %v757, %v759
    %v761 = vrot.slane %v752, %v760
    %v762 = vcombine.high %v761, %v761
    %764 = vst [vmem:[#allocation2 + $0x2] sm:$0x1] %v762
    %s765 = scalar_lea.vmem %s0, 16
    %v766 = vld [vmem:[%s765] sm:$0xff]
    %v767 = vld [vmem:[%s765 + $0x8] sm:$0xff]
    %v768 = vld [vmem:[#allocation3] sm:$0xff]
    %v769 = vld [vmem:[#allocation3 + $0x8] sm:$0xff]
    %v770 = vld [vmem:[#allocation3 + $0x10] sm:$0xff]
    %v771 = vld [vmem:[#allocation3 + $0x18] sm:$0xff]
    %v772 = vld [vmem:[#allocation3 + $0x20] sm:$0xff]
    %v773 = vld [vmem:[#allocation3 + $0x28] sm:$0xff]
    %v774 = vld [vmem:[#allocation3 + $0x30] sm:$0xff]
    %v775 = vld [vmem:[#allocation3 + $0x38] sm:$0xff]
    %v776 = vld [vmem:[#allocation3 + $0x40] sm:$0xff]
    %v777 = vld [vmem:[#allocation3 + $0x48] sm:$0xff]
    %v778 = vld [vmem:[#allocation3 + $0x50] sm:$0xff]
    %v779 = vld [vmem:[#allocation3 + $0x58] sm:$0xff]
    %v780 = vld [vmem:[#allocation3 + $0x60] sm:$0xff]
    %v781 = vld [vmem:[#allocation3 + $0x68] sm:$0xff]
    %v782 = vld [vmem:[#allocation3 + $0x70] sm:$0xff]
    %v783 = vld [vmem:[#allocation3 + $0x78] sm:$0xff]
    %v784 = vld [vmem:[#allocation3 + $0x80] sm:$0xff]
    %v785 = vld [vmem:[#allocation3 + $0x88] sm:$0xff]
    %v786 = vld [vmem:[#allocation3 + $0x90] sm:$0xff]
    %v787 = vld [vmem:[#allocation3 + $0x98] sm:$0xff]
    %v788 = vld [vmem:[#allocation3 + $0xa0] sm:$0x3]
    %v789 = vld [vmem:[#allocation3 + $0xa8] sm:$0x3]
    %v790 = vld [vmem:[#allocation3 + $0xb0] sm:$0x3]
    %v791 = vld [vmem:[#allocation3 + $0xb8] sm:$0x3]
    %v793 = vsel %vm108, %v766, 0
    %v796 = vsel %vm108, %v767, 0
    %v799 = vsel %vm115, %v788, 0
    %v802 = vsel %vm115, %v789, 0
    %v805 = vsel %vm115, %v790, 0
    %v808 = vsel %vm115, %v791, 0
    %810 = vmatprep.subr.mxu0 %v769
    %811 = vmatpush1.msra.mxu0 %v768
    %812 = vmatprep.subr.mxu0 %v773
    %813 = vmatpush1.msra.mxu0 %v772
    %814 = vmatprep.subr.mxu0 %v777
    %815 = vmatpush1.msra.mxu0 %v776
    %816 = vmatprep.subr.mxu0 %v781
    %817 = vmatpush1.msra.mxu0 %v780
    %818 = vmatprep.subr.mxu0 %v785
    %819 = vmatpush1.msra.mxu0 %v784
    %820 = vmatprep.subr.mxu0 %v802
    %821 = vmatpush1.msra.mxu0 %v799
    %822 = vmatprep.subr.mxu0 0.0
    %823 = vmatpush1.msra.mxu0 0.0
    %824 = vmatprep.subr.mxu0 0.0
    %825 = vmatpush1.msra.mxu0 0.0
    %826 = vmatprep.subr.mxu0 0.0
    %827 = vmatpush1.msra.mxu0 0.0
    %828 = vmatprep.subr.mxu0 0.0
    %829 = vmatpush1.msra.mxu0 0.0
    %830 = vmatprep.subr.mxu0 0.0
    %831 = vmatpush1.msra.mxu0 0.0
    %832 = vmatprep.subr.mxu0 0.0
    %833 = vmatpush1.msra.mxu0 0.0
    %834 = vmatprep.subr.mxu0 0.0
    %835 = vmatpush1.msra.mxu0 0.0
    %836 = vmatprep.subr.mxu0 0.0
    %837 = vmatpush1.msra.mxu0 0.0
    %838 = vmatprep.subr.mxu0 0.0
    %839 = vmatpush1.msra.mxu0 0.0
    %840 = vmatprep.subr.mxu0 0.0
    %841 = vmatpush1.msra.mxu0 0.0
    %842 = vmatprep.subr.mxu0 0.0
    %843 = vmatpush1.msra.mxu0 0.0
    %844 = vmatprep.subr.mxu0 0.0
    %845 = vmatpush1.msra.mxu0 0.0
    %846 = vmatprep.subr.mxu0 0.0
    %847 = vmatpush1.msra.mxu0 0.0
    %848 = vmatprep.subr.mxu0 0.0
    %849 = vmatpush1.msra.mxu0 0.0
    %850 = vmatprep.subr.mxu0 0.0
    %851 = vmatpush1.msra.mxu0 0.0
    %852 = vmatprep.subr.mxu0 0.0
    %853 = vmatpush1.msra.mxu0 0.0
    %854 = vmatprep.subr.mxu0 0.0
    %855 = vmatpush1.msra.mxu0 0.0
    %856 = vmatprep.subr.mxu0 0.0
    %857 = vmatpush1.msra.mxu0 0.0
    %858 = vmatprep.subr.mxu0 0.0
    %859 = vmatpush1.msra.mxu0 0.0
    %860 = vmatprep.subr.mxu0 0.0
    %861 = vmatpush1.msra.mxu0 0.0
    %862 = vmatprep.subr.mxu0 0.0
    %863 = vmatpush1.msra.mxu0 0.0
    %864 = vmatprep.subr.mxu0 0.0
    %865 = vmatpush1.msra.mxu0 0.0
    %866 = vmatprep.subr.mxu0 0.0
    %867 = vmatpush1.msra.mxu0 0.0
    %868 = vmatprep.subr.mxu0 0.0
    %869 = vmatpush1.msra.mxu0 0.0
    %870 = vmatprep.subr.mxu0 0.0
    %871 = vmatpush1.msra.mxu0 0.0
    %872 = vmatprep.subr.mxu0 0.0
    %873 = vmatpush1.msra.mxu0 0.0
    %874 = vmatprep.mubr.f32.mxu0 0.0
    %875 = vmatmul.mubr.f32.gmra.mrb[0].mxu0 %v793
    %v876 = vpop.f32.mrb[0].mxu0
    %v877 = vadd.f32 0.0, %v876
    %v878 = vpop.f32.mrb[0].mxu0
    %v879 = vadd.f32 0.0, %v878
    %880 = vmatprep.mubr.f32.mxu0 0.0
    %881 = vmatmul.mubr.f32.gmra.mrb[0].mxu0 %v796
    %v882 = vpop.f32.mrb[0].mxu0
    %v883 = vadd.f32 0.0, %v882
    %v884 = vpop.f32.mrb[0].mxu0
    %v885 = vadd.f32 0.0, %v884
    %886 = vdwg.mxu0
    %887 = vmatprep.subr.mxu0 %v771
    %888 = vmatpush1.msra.mxu0 %v770
    %889 = vmatprep.subr.mxu0 %v775
    %890 = vmatpush1.msra.mxu0 %v774
    %891 = vmatprep.subr.mxu0 %v779
    %892 = vmatpush1.msra.mxu0 %v778
    %893 = vmatprep.subr.mxu0 %v783
    %894 = vmatpush1.msra.mxu0 %v782
    %895 = vmatprep.subr.mxu0 %v787
    %896 = vmatpush1.msra.mxu0 %v786
    %897 = vmatprep.subr.mxu0 %v808
    %898 = vmatpush1.msra.mxu0 %v805
    %899 = vmatprep.subr.mxu0 0.0
    %900 = vmatpush1.msra.mxu0 0.0
    %901 = vmatprep.subr.mxu0 0.0
    %902 = vmatpush1.msra.mxu0 0.0
    %903 = vmatprep.subr.mxu0 0.0
    %904 = vmatpush1.msra.mxu0 0.0
    %905 = vmatprep.subr.mxu0 0.0
    %906 = vmatpush1.msra.mxu0 0.0
    %907 = vmatprep.subr.mxu0 0.0
    %908 = vmatpush1.msra.mxu0 0.0
    %909 = vmatprep.subr.mxu0 0.0
    %910 = vmatpush1.msra.mxu0 0.0
    %911 = vmatprep.subr.mxu0 0.0
    %912 = vmatpush1.msra.mxu0 0.0
    %913 = vmatprep.subr.mxu0 0.0
    %914 = vmatpush1.msra.mxu0 0.0
    %915 = vmatprep.subr.mxu0 0.0
    %916 = vmatpush1.msra.mxu0 0.0
    %917 = vmatprep.subr.mxu0 0.0
    %918 = vmatpush1.msra.mxu0 0.0
    %919 = vmatprep.subr.mxu0 0.0
    %920 = vmatpush1.msra.mxu0 0.0
    %921 = vmatprep.subr.mxu0 0.0
    %922 = vmatpush1.msra.mxu0 0.0
    %923 = vmatprep.subr.mxu0 0.0
    %924 = vmatpush1.msra.mxu0 0.0
    %925 = vmatprep.subr.mxu0 0.0
    %926 = vmatpush1.msra.mxu0 0.0
    %927 = vmatprep.subr.mxu0 0.0
    %928 = vmatpush1.msra.mxu0 0.0
    %929 = vmatprep.subr.mxu0 0.0
    %930 = vmatpush1.msra.mxu0 0.0
    %931 = vmatprep.subr.mxu0 0.0
    %932 = vmatpush1.msra.mxu0 0.0
    %933 = vmatprep.subr.mxu0 0.0
    %934 = vmatpush1.msra.mxu0 0.0
    %935 = vmatprep.subr.mxu0 0.0
    %936 = vmatpush1.msra.mxu0 0.0
    %937 = vmatprep.subr.mxu0 0.0
    %938 = vmatpush1.msra.mxu0 0.0
    %939 = vmatprep.subr.mxu0 0.0
    %940 = vmatpush1.msra.mxu0 0.0
    %941 = vmatprep.subr.mxu0 0.0
    %942 = vmatpush1.msra.mxu0 0.0
    %943 = vmatprep.subr.mxu0 0.0
    %944 = vmatpush1.msra.mxu0 0.0
    %945 = vmatprep.subr.mxu0 0.0
    %946 = vmatpush1.msra.mxu0 0.0
    %947 = vmatprep.subr.mxu0 0.0
    %948 = vmatpush1.msra.mxu0 0.0
    %949 = vmatprep.subr.mxu0 0.0
    %950 = vmatpush1.msra.mxu0 0.0
    %951 = vmatprep.mubr.f32.mxu0 0.0
    %952 = vmatmul.mubr.f32.gmra.mrb[0].mxu0 %v793
    %v953 = vpop.f32.mrb[0].mxu0
    %v954 = vadd.f32 0.0, %v953
    %v955 = vpop.f32.mrb[0].mxu0
    %v956 = vadd.f32 0.0, %v955
    %957 = vmatprep.mubr.f32.mxu0 0.0
    %958 = vmatmul.mubr.f32.gmra.mrb[0].mxu0 %v796
    %v959 = vpop.f32.mrb[0].mxu0
    %v960 = vadd.f32 0.0, %v959
    %v961 = vpop.f32.mrb[0].mxu0
    %v962 = vadd.f32 0.0, %v961
    %963 = vdwg.mxu0
    %v964 = vmax.f32 %v877, %v883
    %v965 = vmax.f32 %v879, %v885
    %v966 = vmax.f32 %v954, %v960
    %v967 = vmax.f32 %v956, %v962
    %v968 = vadd.f32 %v964, %v290
    %v969 = vadd.f32 %v965, %v294
    %v970 = vadd.f32 %v966, %v298
    %v971 = vadd.f32 %v967, %v302
    %v972 = vmax.f32 %v968, %v970
    %v973 = vmax.f32 %v969, %v971
    %v974 = vmax.f32 %v972, 0.0
    %v975 = vmax.f32 %v973, 0.0
    %v976 = vld [vmem:[#allocation6] sm:$0xff]
    %v977 = vld [vmem:[#allocation6 + $0x8] sm:$0xff]
    %v978 = vld [vmem:[#allocation6 + $0x10] sm:$0xff]
    %v979 = vld [vmem:[#allocation6 + $0x18] sm:$0xff]
    %v980 = vld [vmem:[#allocation6 + $0x20] sm:$0xff]
    %v981 = vld [vmem:[#allocation6 + $0x28] sm:$0xff]
    %v982 = vld [vmem:[#allocation6 + $0x30] sm:$0xff]
    %v983 = vld [vmem:[#allocation6 + $0x38] sm:$0xff]
    %v984 = vld [vmem:[#allocation6 + $0x40] sm:$0xff]
    %v985 = vld [vmem:[#allocation6 + $0x48] sm:$0xff]
    %v986 = vld [vmem:[#allocation6 + $0x50] sm:$0xff]
    %v987 = vld [vmem:[#allocation6 + $0x58] sm:$0xff]
    %v988 = vld [vmem:[#allocation6 + $0x60] sm:$0xff]
    %v989 = vld [vmem:[#allocation6 + $0x68] sm:$0xff]
    %v990 = vld [vmem:[#allocation6 + $0x70] sm:$0xff]
    %v991 = vld [vmem:[#allocation6 + $0x78] sm:$0xff]
    %v992 = vld [vmem:[#allocation6 + $0x80] sm:$0xff]
    %v993 = vld [vmem:[#allocation6 + $0x88] sm:$0xff]
    %v994 = vld [vmem:[#allocation6 + $0x90] sm:$0xff]
    %v995 = vld [vmem:[#allocation6 + $0x98] sm:$0xff]
    %v996 = vld [vmem:[#allocation6 + $0xa0] sm:$0xff]
    %v997 = vld [vmem:[#allocation6 + $0xa8] sm:$0xff]
    %v998 = vld [vmem:[#allocation6 + $0xb0] sm:$0xff]
    %v999 = vld [vmem:[#allocation6 + $0xb8] sm:$0xff]
    %v1000 = vld [vmem:[#allocation6 + $0xc0] sm:$0xff]
    %v1001 = vld [vmem:[#allocation6 + $0xc8] sm:$0xff]
    %v1002 = vld [vmem:[#allocation6 + $0xd0] sm:$0xff]
    %v1003 = vld [vmem:[#allocation6 + $0xd8] sm:$0xff]
    %v1004 = vld [vmem:[#allocation6 + $0xe0] sm:$0xff]
    %v1005 = vld [vmem:[#allocation6 + $0xe8] sm:$0xff]
    %v1006 = vld [vmem:[#allocation6 + $0xf0] sm:$0xff]
    %v1007 = vld [vmem:[#allocation6 + $0xf8] sm:$0xff]
    %v1008 = vld [vmem:[#allocation6 + $0x100] sm:$0xff]
    %v1009 = vld [vmem:[#allocation6 + $0x108] sm:$0xff]
    %v1010 = vld [vmem:[#allocation6 + $0x110] sm:$0xff]
    %v1011 = vld [vmem:[#allocation6 + $0x118] sm:$0xff]
    %v1012 = vld [vmem:[#allocation6 + $0x120] sm:$0xff]
    %v1013 = vld [vmem:[#allocation6 + $0x128] sm:$0xff]
    %v1014 = vld [vmem:[#allocation6 + $0x130] sm:$0xff]
    %v1015 = vld [vmem:[#allocation6 + $0x138] sm:$0xff]
    %v1016 = vld [vmem:[#allocation6 + $0x140] sm:$0xff]
    %v1017 = vld [vmem:[#allocation6 + $0x148] sm:$0xff]
    %v1018 = vld [vmem:[#allocation6 + $0x150] sm:$0xff]
    %v1019 = vld [vmem:[#allocation6 + $0x158] sm:$0xff]
    %v1020 = vld [vmem:[#allocation6 + $0x160] sm:$0xff]
    %v1021 = vld [vmem:[#allocation6 + $0x168] sm:$0xff]
    %v1022 = vld [vmem:[#allocation6 + $0x170] sm:$0xff]
    %v1023 = vld [vmem:[#allocation6 + $0x178] sm:$0xff]
    %v1024 = vld [vmem:[#allocation6 + $0x180] sm:$0xff]
    %v1025 = vld [vmem:[#allocation6 + $0x188] sm:$0xff]
    %v1026 = vld [vmem:[#allocation6 + $0x190] sm:$0xff]
    %v1027 = vld [vmem:[#allocation6 + $0x198] sm:$0xff]
    %v1028 = vld [vmem:[#allocation6 + $0x1a0] sm:$0xff]
    %v1029 = vld [vmem:[#allocation6 + $0x1a8] sm:$0xff]
    %v1030 = vld [vmem:[#allocation6 + $0x1b0] sm:$0xff]
    %v1031 = vld [vmem:[#allocation6 + $0x1b8] sm:$0xff]
    %v1032 = vld [vmem:[#allocation6 + $0x1c0] sm:$0xff]
    %v1033 = vld [vmem:[#allocation6 + $0x1c8] sm:$0xff]
    %v1034 = vld [vmem:[#allocation6 + $0x1d0] sm:$0xff]
    %v1035 = vld [vmem:[#allocation6 + $0x1d8] sm:$0xff]
    %v1036 = vld [vmem:[#allocation6 + $0x1e0] sm:$0xff]
    %v1037 = vld [vmem:[#allocation6 + $0x1e8] sm:$0xff]
    %v1038 = vld [vmem:[#allocation6 + $0x1f0] sm:$0xff]
    %v1039 = vld [vmem:[#allocation6 + $0x1f8] sm:$0xff]
    %v1040 = vld [vmem:[%s379] sm:$0xff]
    %v1041 = vld [vmem:[%s379 + $0x8] sm:$0xff]
    %v1042 = vld [vmem:[%s379 + $0x10] sm:$0xff]
    %v1043 = vld [vmem:[%s379 + $0x18] sm:$0xff]
    %v1044 = vld [vmem:[%s379 + $0x20] sm:$0xff]
    %v1045 = vld [vmem:[%s379 + $0x28] sm:$0xff]
    %v1046 = vld [vmem:[%s379 + $0x30] sm:$0xff]
    %v1047 = vld [vmem:[%s379 + $0x38] sm:$0xff]
    %v1048 = vld [vmem:[%s379 + $0x40] sm:$0xff]
    %v1049 = vld [vmem:[%s379 + $0x48] sm:$0xff]
    %v1050 = vld [vmem:[%s379 + $0x50] sm:$0xff]
    %v1051 = vld [vmem:[%s379 + $0x58] sm:$0xff]
    %v1052 = vld [vmem:[%s379 + $0x60] sm:$0xff]
    %v1053 = vld [vmem:[%s379 + $0x68] sm:$0xff]
    %v1054 = vld [vmem:[%s379 + $0x70] sm:$0xff]
    %v1055 = vld [vmem:[%s379 + $0x78] sm:$0xff]
    %v1056 = vld [vmem:[%s379 + $0x80] sm:$0xff]
    %v1057 = vld [vmem:[%s379 + $0x88] sm:$0xff]
    %v1058 = vld [vmem:[%s379 + $0x90] sm:$0xff]
    %v1059 = vld [vmem:[%s379 + $0x98] sm:$0xff]
    %v1060 = vld [vmem:[%s379 + $0xa0] sm:$0xff]
    %v1061 = vld [vmem:[%s379 + $0xa8] sm:$0xff]
    %v1062 = vld [vmem:[%s379 + $0xb0] sm:$0xff]
    %v1063 = vld [vmem:[%s379 + $0xb8] sm:$0xff]
    %v1064 = vld [vmem:[%s379 + $0xc0] sm:$0xff]
    %v1065 = vld [vmem:[%s379 + $0xc8] sm:$0xff]
    %v1066 = vld [vmem:[%s379 + $0xd0] sm:$0xff]
    %v1067 = vld [vmem:[%s379 + $0xd8] sm:$0xff]
    %v1068 = vld [vmem:[%s379 + $0xe0] sm:$0xff]
    %v1069 = vld [vmem:[%s379 + $0xe8] sm:$0xff]
    %v1070 = vld [vmem:[%s379 + $0xf0] sm:$0xff]
    %v1071 = vld [vmem:[%s379 + $0xf8] sm:$0xff]
    %v1072 = vld [vmem:[%s379 + $0x100] sm:$0xff]
    %v1073 = vld [vmem:[%s379 + $0x108] sm:$0xff]
    %v1074 = vld [vmem:[%s379 + $0x110] sm:$0xff]
    %v1075 = vld [vmem:[%s379 + $0x118] sm:$0xff]
    %v1076 = vld [vmem:[%s379 + $0x120] sm:$0xff]
    %v1077 = vld [vmem:[%s379 + $0x128] sm:$0xff]
    %v1078 = vld [vmem:[%s379 + $0x130] sm:$0xff]
    %v1079 = vld [vmem:[%s379 + $0x138] sm:$0xff]
    %v1080 = vld [vmem:[%s379 + $0x140] sm:$0xff]
    %v1081 = vld [vmem:[%s379 + $0x148] sm:$0xff]
    %v1082 = vld [vmem:[%s379 + $0x150] sm:$0xff]
    %v1083 = vld [vmem:[%s379 + $0x158] sm:$0xff]
    %v1084 = vld [vmem:[%s379 + $0x160] sm:$0xff]
    %v1085 = vld [vmem:[%s379 + $0x168] sm:$0xff]
    %v1086 = vld [vmem:[%s379 + $0x170] sm:$0xff]
    %v1087 = vld [vmem:[%s379 + $0x178] sm:$0xff]
    %v1088 = vld [vmem:[%s379 + $0x180] sm:$0xff]
    %v1089 = vld [vmem:[%s379 + $0x188] sm:$0xff]
    %v1090 = vld [vmem:[%s379 + $0x190] sm:$0xff]
    %v1091 = vld [vmem:[%s379 + $0x198] sm:$0xff]
    %v1092 = vld [vmem:[%s379 + $0x1a0] sm:$0xff]
    %v1093 = vld [vmem:[%s379 + $0x1a8] sm:$0xff]
    %v1094 = vld [vmem:[%s379 + $0x1b0] sm:$0xff]
    %v1095 = vld [vmem:[%s379 + $0x1b8] sm:$0xff]
    %v1096 = vld [vmem:[%s379 + $0x1c0] sm:$0xff]
    %v1097 = vld [vmem:[%s379 + $0x1c8] sm:$0xff]
    %v1098 = vld [vmem:[%s379 + $0x1d0] sm:$0xff]
    %v1099 = vld [vmem:[%s379 + $0x1d8] sm:$0xff]
    %v1100 = vld [vmem:[%s379 + $0x1e0] sm:$0xff]
    %v1101 = vld [vmem:[%s379 + $0x1e8] sm:$0xff]
    %v1102 = vld [vmem:[%s379 + $0x1f0] sm:$0xff]
    %v1103 = vld [vmem:[%s379 + $0x1f8] sm:$0xff]
    %v1106 = vrot.slane %v974, 1
    %v1107 = vrot.slane %v975, 1
    %1110 = vmatprep.subr.mxu0 %v1041
    %1111 = vmatpush1.msra.mxu0 %v1040
    %1112 = vmatprep.subr.mxu0 %v1043
    %1113 = vmatpush1.msra.mxu0 %v1042
    %1114 = vmatprep.subr.mxu0 %v1045
    %1115 = vmatpush1.msra.mxu0 %v1044
    %1116 = vmatprep.subr.mxu0 %v1047
    %1117 = vmatpush1.msra.mxu0 %v1046
    %1118 = vmatprep.subr.mxu0 %v1049
    %1119 = vmatpush1.msra.mxu0 %v1048
    %1120 = vmatprep.subr.mxu0 %v1051
    %1121 = vmatpush1.msra.mxu0 %v1050
    %1122 = vmatprep.subr.mxu0 %v1053
    %1123 = vmatpush1.msra.mxu0 %v1052
    %1124 = vmatprep.subr.mxu0 %v1055
    %1125 = vmatpush1.msra.mxu0 %v1054
    %1126 = vmatprep.subr.mxu0 %v1057
    %1127 = vmatpush1.msra.mxu0 %v1056
    %1128 = vmatprep.subr.mxu0 %v1059
    %1129 = vmatpush1.msra.mxu0 %v1058
    %1130 = vmatprep.subr.mxu0 %v1061
    %1131 = vmatpush1.msra.mxu0 %v1060
    %1132 = vmatprep.subr.mxu0 %v1063
    %1133 = vmatpush1.msra.mxu0 %v1062
    %1134 = vmatprep.subr.mxu0 %v1065
    %1135 = vmatpush1.msra.mxu0 %v1064
    %1136 = vmatprep.subr.mxu0 %v1067
    %1137 = vmatpush1.msra.mxu0 %v1066
    %1138 = vmatprep.subr.mxu0 %v1069
    %1139 = vmatpush1.msra.mxu0 %v1068
    %1140 = vmatprep.subr.mxu0 %v1071
    %1141 = vmatpush1.msra.mxu0 %v1070
    %1142 = vmatprep.subr.mxu0 %v1073
    %1143 = vmatpush1.msra.mxu0 %v1072
    %1144 = vmatprep.subr.mxu0 %v1075
    %1145 = vmatpush1.msra.mxu0 %v1074
    %1146 = vmatprep.subr.mxu0 %v1077
    %1147 = vmatpush1.msra.mxu0 %v1076
    %1148 = vmatprep.subr.mxu0 %v1079
    %1149 = vmatpush1.msra.mxu0 %v1078
    %1150 = vmatprep.subr.mxu0 %v1081
    %1151 = vmatpush1.msra.mxu0 %v1080
    %1152 = vmatprep.subr.mxu0 %v1083
    %1153 = vmatpush1.msra.mxu0 %v1082
    %1154 = vmatprep.subr.mxu0 %v1085
    %1155 = vmatpush1.msra.mxu0 %v1084
    %1156 = vmatprep.subr.mxu0 %v1087
    %1157 = vmatpush1.msra.mxu0 %v1086
    %1158 = vmatprep.subr.mxu0 %v1089
    %1159 = vmatpush1.msra.mxu0 %v1088
    %1160 = vmatprep.subr.mxu0 %v1091
    %1161 = vmatpush1.msra.mxu0 %v1090
    %1162 = vmatprep.subr.mxu0 %v1093
    %1163 = vmatpush1.msra.mxu0 %v1092
    %1164 = vmatprep.subr.mxu0 %v1095
    %1165 = vmatpush1.msra.mxu0 %v1094
    %1166 = vmatprep.subr.mxu0 %v1097
    %1167 = vmatpush1.msra.mxu0 %v1096
    %1168 = vmatprep.subr.mxu0 %v1099
    %1169 = vmatpush1.msra.mxu0 %v1098
    %1170 = vmatprep.subr.mxu0 %v1101
    %1171 = vmatpush1.msra.mxu0 %v1100
    %1172 = vmatprep.subr.mxu0 %v1103
    %1173 = vmatpush1.msra.mxu0 %v1102
    %1174 = vmatprep.mubr.f32.mxu0 %v1107
    %1175 = vmatmul.mubr.f32.gmra.mrb[0].mxu0 %v1106
    %v1176 = vpop.f32.mrb[0].mxu0
    %v1177 = vadd.f32 0.0, %v1176
    %v1178 = vpop.f32.mrb[0].mxu0
    %v1179 = vadd.f32 0.0, %v1178
    %1180 = vdwg.mxu0
    %1181 = vmatprep.subr.mxu0 %v977
    %1182 = vmatpush1.msra.mxu0 %v976
    %1183 = vmatprep.subr.mxu0 %v979
    %1184 = vmatpush1.msra.mxu0 %v978
    %1185 = vmatprep.subr.mxu0 %v981
    %1186 = vmatpush1.msra.mxu0 %v980
    %1187 = vmatprep.subr.mxu0 %v983
    %1188 = vmatpush1.msra.mxu0 %v982
    %1189 = vmatprep.subr.mxu0 %v985
    %1190 = vmatpush1.msra.mxu0 %v984
    %1191 = vmatprep.subr.mxu0 %v987
    %1192 = vmatpush1.msra.mxu0 %v986
    %1193 = vmatprep.subr.mxu0 %v989
    %1194 = vmatpush1.msra.mxu0 %v988
    %1195 = vmatprep.subr.mxu0 %v991
    %1196 = vmatpush1.msra.mxu0 %v990
    %1197 = vmatprep.subr.mxu0 %v993
    %1198 = vmatpush1.msra.mxu0 %v992
    %1199 = vmatprep.subr.mxu0 %v995
    %1200 = vmatpush1.msra.mxu0 %v994
    %1201 = vmatprep.subr.mxu0 %v997
    %1202 = vmatpush1.msra.mxu0 %v996
    %1203 = vmatprep.subr.mxu0 %v999
    %1204 = vmatpush1.msra.mxu0 %v998
    %1205 = vmatprep.subr.mxu0 %v1001
    %1206 = vmatpush1.msra.mxu0 %v1000
    %1207 = vmatprep.subr.mxu0 %v1003
    %1208 = vmatpush1.msra.mxu0 %v1002
    %1209 = vmatprep.subr.mxu0 %v1005
    %1210 = vmatpush1.msra.mxu0 %v1004
    %1211 = vmatprep.subr.mxu0 %v1007
    %1212 = vmatpush1.msra.mxu0 %v1006
    %1213 = vmatprep.subr.mxu0 %v1009
    %1214 = vmatpush1.msra.mxu0 %v1008
    %1215 = vmatprep.subr.mxu0 %v1011
    %1216 = vmatpush1.msra.mxu0 %v1010
    %1217 = vmatprep.subr.mxu0 %v1013
    %1218 = vmatpush1.msra.mxu0 %v1012
    %1219 = vmatprep.subr.mxu0 %v1015
    %1220 = vmatpush1.msra.mxu0 %v1014
    %1221 = vmatprep.subr.mxu0 %v1017
    %1222 = vmatpush1.msra.mxu0 %v1016
    %1223 = vmatprep.subr.mxu0 %v1019
    %1224 = vmatpush1.msra.mxu0 %v1018
    %1225 = vmatprep.subr.mxu0 %v1021
    %1226 = vmatpush1.msra.mxu0 %v1020
    %1227 = vmatprep.subr.mxu0 %v1023
    %1228 = vmatpush1.msra.mxu0 %v1022
    %1229 = vmatprep.subr.mxu0 %v1025
    %1230 = vmatpush1.msra.mxu0 %v1024
    %1231 = vmatprep.subr.mxu0 %v1027
    %1232 = vmatpush1.msra.mxu0 %v1026
    %1233 = vmatprep.subr.mxu0 %v1029
    %1234 = vmatpush1.msra.mxu0 %v1028
    %1235 = vmatprep.subr.mxu0 %v1031
    %1236 = vmatpush1.msra.mxu0 %v1030
    %1237 = vmatprep.subr.mxu0 %v1033
    %1238 = vmatpush1.msra.mxu0 %v1032
    %1239 = vmatprep.subr.mxu0 %v1035
    %1240 = vmatpush1.msra.mxu0 %v1034
    %1241 = vmatprep.subr.mxu0 %v1037
    %1242 = vmatpush1.msra.mxu0 %v1036
    %1243 = vmatprep.subr.mxu0 %v1039
    %1244 = vmatpush1.msra.mxu0 %v1038
    %1245 = vmatprep.mubr.f32.mxu0 %v975
    %1246 = vmatmul.mubr.f32.gmra.mrb[0].mxu0 %v974
    %v1247 = vpop.f32.mrb[0].mxu0
    %v1248 = vadd.f32 %v1177, %v1247
    %v1249 = vpop.f32.mrb[0].mxu0
    %v1250 = vadd.f32 %v1179, %v1249
    %1251 = vdwg.mxu0
    %v1252 = vld [vmem:[%s592] sm:$0xff]
    %v1253 = vld [vmem:[%s592 + $0x8] sm:$0xff]
    %v1254 = vld [vmem:[%s592 + $0x10] sm:$0xff]
    %v1255 = vld [vmem:[%s592 + $0x18] sm:$0xff]
    %v1256 = vld [vmem:[%s592 + $0x20] sm:$0xff]
    %v1257 = vld [vmem:[%s592 + $0x28] sm:$0xff]
    %v1258 = vld [vmem:[%s592 + $0x30] sm:$0xff]
    %v1259 = vld [vmem:[%s592 + $0x38] sm:$0xff]
    %v1260 = vld [vmem:[%s592 + $0x40] sm:$0xff]
    %v1261 = vld [vmem:[%s592 + $0x48] sm:$0xff]
    %v1262 = vld [vmem:[%s592 + $0x50] sm:$0xff]
    %v1263 = vld [vmem:[%s592 + $0x58] sm:$0xff]
    %v1264 = vld [vmem:[%s592 + $0x60] sm:$0xff]
    %v1265 = vld [vmem:[%s592 + $0x68] sm:$0xff]
    %v1266 = vld [vmem:[%s592 + $0x70] sm:$0xff]
    %v1267 = vld [vmem:[%s592 + $0x78] sm:$0xff]
    %v1268 = vld [vmem:[%s592 + $0x80] sm:$0xff]
    %v1269 = vld [vmem:[%s592 + $0x88] sm:$0xff]
    %v1270 = vld [vmem:[%s592 + $0x90] sm:$0xff]
    %v1271 = vld [vmem:[%s592 + $0x98] sm:$0xff]
    %v1272 = vld [vmem:[%s592 + $0xa0] sm:$0xff]
    %v1273 = vld [vmem:[%s592 + $0xa8] sm:$0xff]
    %v1274 = vld [vmem:[%s592 + $0xb0] sm:$0xff]
    %v1275 = vld [vmem:[%s592 + $0xb8] sm:$0xff]
    %v1276 = vld [vmem:[%s592 + $0xc0] sm:$0xff]
    %v1277 = vld [vmem:[%s592 + $0xc8] sm:$0xff]
    %v1278 = vld [vmem:[%s592 + $0xd0] sm:$0xff]
    %v1279 = vld [vmem:[%s592 + $0xd8] sm:$0xff]
    %v1280 = vld [vmem:[%s592 + $0xe0] sm:$0xff]
    %v1281 = vld [vmem:[%s592 + $0xe8] sm:$0xff]
    %v1282 = vld [vmem:[%s592 + $0xf0] sm:$0xff]
    %v1283 = vld [vmem:[%s592 + $0xf8] sm:$0xff]
    %v1284 = vld [vmem:[%s592 + $0x100] sm:$0xff]
    %v1285 = vld [vmem:[%s592 + $0x108] sm:$0xff]
    %v1286 = vld [vmem:[%s592 + $0x110] sm:$0xff]
    %v1287 = vld [vmem:[%s592 + $0x118] sm:$0xff]
    %v1288 = vld [vmem:[%s592 + $0x120] sm:$0xff]
    %v1289 = vld [vmem:[%s592 + $0x128] sm:$0xff]
    %v1290 = vld [vmem:[%s592 + $0x130] sm:$0xff]
    %v1291 = vld [vmem:[%s592 + $0x138] sm:$0xff]
    %v1292 = vld [vmem:[%s592 + $0x140] sm:$0xff]
    %v1293 = vld [vmem:[%s592 + $0x148] sm:$0xff]
    %v1294 = vld [vmem:[%s592 + $0x150] sm:$0xff]
    %v1295 = vld [vmem:[%s592 + $0x158] sm:$0xff]
    %v1296 = vld [vmem:[%s592 + $0x160] sm:$0xff]
    %v1297 = vld [vmem:[%s592 + $0x168] sm:$0xff]
    %v1298 = vld [vmem:[%s592 + $0x170] sm:$0xff]
    %v1299 = vld [vmem:[%s592 + $0x178] sm:$0xff]
    %v1300 = vld [vmem:[%s592 + $0x180] sm:$0xff]
    %v1301 = vld [vmem:[%s592 + $0x188] sm:$0xff]
    %v1302 = vld [vmem:[%s592 + $0x190] sm:$0xff]
    %v1303 = vld [vmem:[%s592 + $0x198] sm:$0xff]
    %v1304 = vld [vmem:[%s592 + $0x1a0] sm:$0xff]
    %v1305 = vld [vmem:[%s592 + $0x1a8] sm:$0xff]
    %v1306 = vld [vmem:[%s592 + $0x1b0] sm:$0xff]
    %v1307 = vld [vmem:[%s592 + $0x1b8] sm:$0xff]
    %v1308 = vld [vmem:[%s592 + $0x1c0] sm:$0xff]
    %v1309 = vld [vmem:[%s592 + $0x1c8] sm:$0xff]
    %v1310 = vld [vmem:[%s592 + $0x1d0] sm:$0xff]
    %v1311 = vld [vmem:[%s592 + $0x1d8] sm:$0xff]
    %v1312 = vld [vmem:[%s592 + $0x1e0] sm:$0xff]
    %v1313 = vld [vmem:[%s592 + $0x1e8] sm:$0xff]
    %v1314 = vld [vmem:[%s592 + $0x1f0] sm:$0xff]
    %v1315 = vld [vmem:[%s592 + $0x1f8] sm:$0xff]
    %v1316 = vrot.slane %v974, 2
    %v1317 = vrot.slane %v975, 2
    %1320 = vmatprep.subr.mxu0 %v1253
    %1321 = vmatpush1.msra.mxu0 %v1252
    %1322 = vmatprep.subr.mxu0 %v1255
    %1323 = vmatpush1.msra.mxu0 %v1254
    %1324 = vmatprep.subr.mxu0 %v1257
    %1325 = vmatpush1.msra.mxu0 %v1256
    %1326 = vmatprep.subr.mxu0 %v1259
    %1327 = vmatpush1.msra.mxu0 %v1258
    %1328 = vmatprep.subr.mxu0 %v1261
    %1329 = vmatpush1.msra.mxu0 %v1260
    %1330 = vmatprep.subr.mxu0 %v1263
    %1331 = vmatpush1.msra.mxu0 %v1262
    %1332 = vmatprep.subr.mxu0 %v1265
    %1333 = vmatpush1.msra.mxu0 %v1264
    %1334 = vmatprep.subr.mxu0 %v1267
    %1335 = vmatpush1.msra.mxu0 %v1266
    %1336 = vmatprep.subr.mxu0 %v1269
    %1337 = vmatpush1.msra.mxu0 %v1268
    %1338 = vmatprep.subr.mxu0 %v1271
    %1339 = vmatpush1.msra.mxu0 %v1270
    %1340 = vmatprep.subr.mxu0 %v1273
    %1341 = vmatpush1.msra.mxu0 %v1272
    %1342 = vmatprep.subr.mxu0 %v1275
    %1343 = vmatpush1.msra.mxu0 %v1274
    %1344 = vmatprep.subr.mxu0 %v1277
    %1345 = vmatpush1.msra.mxu0 %v1276
    %1346 = vmatprep.subr.mxu0 %v1279
    %1347 = vmatpush1.msra.mxu0 %v1278
    %1348 = vmatprep.subr.mxu0 %v1281
    %1349 = vmatpush1.msra.mxu0 %v1280
    %1350 = vmatprep.subr.mxu0 %v1283
    %1351 = vmatpush1.msra.mxu0 %v1282
    %1352 = vmatprep.subr.mxu0 %v1285
    %1353 = vmatpush1.msra.mxu0 %v1284
    %1354 = vmatprep.subr.mxu0 %v1287
    %1355 = vmatpush1.msra.mxu0 %v1286
    %1356 = vmatprep.subr.mxu0 %v1289
    %1357 = vmatpush1.msra.mxu0 %v1288
    %1358 = vmatprep.subr.mxu0 %v1291
    %1359 = vmatpush1.msra.mxu0 %v1290
    %1360 = vmatprep.subr.mxu0 %v1293
    %1361 = vmatpush1.msra.mxu0 %v1292
    %1362 = vmatprep.subr.mxu0 %v1295
    %1363 = vmatpush1.msra.mxu0 %v1294
    %1364 = vmatprep.subr.mxu0 %v1297
    %1365 = vmatpush1.msra.mxu0 %v1296
    %1366 = vmatprep.subr.mxu0 %v1299
    %1367 = vmatpush1.msra.mxu0 %v1298
    %1368 = vmatprep.subr.mxu0 %v1301
    %1369 = vmatpush1.msra.mxu0 %v1300
    %1370 = vmatprep.subr.mxu0 %v1303
    %1371 = vmatpush1.msra.mxu0 %v1302
    %1372 = vmatprep.subr.mxu0 %v1305
    %1373 = vmatpush1.msra.mxu0 %v1304
    %1374 = vmatprep.subr.mxu0 %v1307
    %1375 = vmatpush1.msra.mxu0 %v1306
    %1376 = vmatprep.subr.mxu0 %v1309
    %1377 = vmatpush1.msra.mxu0 %v1308
    %1378 = vmatprep.subr.mxu0 %v1311
    %1379 = vmatpush1.msra.mxu0 %v1310
    %1380 = vmatprep.subr.mxu0 %v1313
    %1381 = vmatpush1.msra.mxu0 %v1312
    %1382 = vmatprep.subr.mxu0 %v1315
    %1383 = vmatpush1.msra.mxu0 %v1314
    %1384 = vmatprep.mubr.f32.mxu0 %v1317
    %1385 = vmatmul.mubr.f32.gmra.mrb[0].mxu0 %v1316
    %v1386 = vpop.f32.mrb[0].mxu0
    %v1387 = vadd.f32 0.0, %v1386
    %v1388 = vpop.f32.mrb[0].mxu0
    %v1389 = vadd.f32 0.0, %v1388
    %1390 = vdwg.mxu0
    %v1391 = vadd.f32 %v1248, %v1387
    %v1392 = vadd.f32 %v1250, %v1389
    %v1393 = vadd.f32 %v1391, %v738
    %v1394 = vadd.f32 %v1392, %v742
    %v1395 = vmax.f32 %v1393, %v1394
    %v1397 = vrot.slane %v1395, 1
    %v1399 = vmax.f32 %v1395, %v1397
    %v1400 = vmax.f32 %v1399, 0.0
    %1401 = vst [vmem:[#allocation2 + $0x1] sm:$0x1] %v1400
    %v1404 = vunpack.c.l.s4 1983009808
    %v1405 = vunpack.c.0.s8 %v1404
    %v1406 = vlaneseq
    %v1407 = vshrl.u32 %v1406, 7
    %v1408 = vsub.s32 %v1405, %v1407
    %v1409 = vrot.slane %v1400, %v1408
    %v1410 = vcombine.high %v1409, %v1409
    %1412 = vst [vmem:[#allocation2 + $0x3] sm:$0x1] %v1410
    %v1413 = vld [vmem:[#allocation2] sm:$0xf]
    %v1414 = vld [vmem:[%s5] sm:$0xff]
    %v1415 = vld [vmem:[%s5 + $0x8] sm:$0xff]
    %v1416 = vld [vmem:[%s5 + $0x10] sm:$0xff]
    %v1417 = vld [vmem:[%s5 + $0x18] sm:$0xff]
    %v1418 = vld [vmem:[%s5 + $0x20] sm:$0xff]
    %v1419 = vld [vmem:[%s5 + $0x28] sm:$0xff]
    %v1420 = vld [vmem:[%s5 + $0x30] sm:$0xff]
    %v1421 = vld [vmem:[%s5 + $0x38] sm:$0xff]
    %v1422 = vld [vmem:[%s5 + $0x40] sm:$0xff]
    %v1423 = vld [vmem:[%s5 + $0x48] sm:$0xff]
    %v1424 = vld [vmem:[%s5 + $0x50] sm:$0xff]
    %v1425 = vld [vmem:[%s5 + $0x58] sm:$0xff]
    %v1426 = vld [vmem:[%s5 + $0x60] sm:$0xff]
    %v1427 = vld [vmem:[%s5 + $0x68] sm:$0xff]
    %v1428 = vld [vmem:[%s5 + $0x70] sm:$0xff]
    %v1429 = vld [vmem:[%s5 + $0x78] sm:$0xff]
    %v1430 = vld [vmem:[%s5 + $0x80] sm:$0xff]
    %v1431 = vld [vmem:[%s5 + $0x88] sm:$0xff]
    %v1432 = vld [vmem:[%s5 + $0x90] sm:$0xff]
    %v1433 = vld [vmem:[%s5 + $0x98] sm:$0xff]
    %v1434 = vld [vmem:[%s5 + $0xa0] sm:$0xff]
    %v1435 = vld [vmem:[%s5 + $0xa8] sm:$0xff]
    %v1436 = vld [vmem:[%s5 + $0xb0] sm:$0xff]
    %v1437 = vld [vmem:[%s5 + $0xb8] sm:$0xff]
    %v1438 = vld [vmem:[%s5 + $0xc0] sm:$0xff]
    %v1439 = vld [vmem:[%s5 + $0xc8] sm:$0xff]
    %v1440 = vld [vmem:[%s5 + $0xd0] sm:$0xff]
    %v1441 = vld [vmem:[%s5 + $0xd8] sm:$0xff]
    %v1442 = vld [vmem:[%s5 + $0xe0] sm:$0xff]
    %v1443 = vld [vmem:[%s5 + $0xe8] sm:$0xff]
    %v1444 = vld [vmem:[%s5 + $0xf0] sm:$0xff]
    %v1445 = vld [vmem:[%s5 + $0xf8] sm:$0xff]
    %v1446 = vld [vmem:[%s6] sm:$0x1]
    %v1448 = vlaneseq
    %v1449 = vshrl.u32 %v1448, 7
    %v1450 = vsub.s32 0, %v1449
    %v1451 = vrot.slane %v1446, %v1450
    %v1455 = vunpack.c.l.s4 1983009808
    %v1456 = vunpack.c.0.s8 %v1455
    %v1457 = vlaneseq
    %v1458 = vshrl.u32 %v1457, 7
    %v1459 = vsub.s32 %v1456, %v1458
    %v1460 = vrot.slane %v1413, %v1459
    %v1461 = vcombine.high %v1460, %v1460
    %1464 = vmatprep.subr.mxu0 0.0
    %1465 = vmatpush1.msra.mxu0 %v1414
    %1466 = vmatprep.subr.mxu0 0.0
    %1467 = vmatpush1.msra.mxu0 %v1415
    %1468 = vmatprep.subr.mxu0 0.0
    %1469 = vmatpush1.msra.mxu0 %v1416
    %1470 = vmatprep.subr.mxu0 0.0
    %1471 = vmatpush1.msra.mxu0 %v1417
    %1472 = vmatprep.subr.mxu0 0.0
    %1473 = vmatpush1.msra.mxu0 %v1418
    %1474 = vmatprep.subr.mxu0 0.0
    %1475 = vmatpush1.msra.mxu0 %v1419
    %1476 = vmatprep.subr.mxu0 0.0
    %1477 = vmatpush1.msra.mxu0 %v1420
    %1478 = vmatprep.subr.mxu0 0.0
    %1479 = vmatpush1.msra.mxu0 %v1421
    %1480 = vmatprep.subr.mxu0 0.0
    %1481 = vmatpush1.msra.mxu0 %v1422
    %1482 = vmatprep.subr.mxu0 0.0
    %1483 = vmatpush1.msra.mxu0 %v1423
    %1484 = vmatprep.subr.mxu0 0.0
    %1485 = vmatpush1.msra.mxu0 %v1424
    %1486 = vmatprep.subr.mxu0 0.0
    %1487 = vmatpush1.msra.mxu0 %v1425
    %1488 = vmatprep.subr.mxu0 0.0
    %1489 = vmatpush1.msra.mxu0 %v1426
    %1490 = vmatprep.subr.mxu0 0.0
    %1491 = vmatpush1.msra.mxu0 %v1427
    %1492 = vmatprep.subr.mxu0 0.0
    %1493 = vmatpush1.msra.mxu0 %v1428
    %1494 = vmatprep.subr.mxu0 0.0
    %1495 = vmatpush1.msra.mxu0 %v1429
    %1496 = vmatprep.subr.mxu0 0.0
    %1497 = vmatpush1.msra.mxu0 %v1430
    %1498 = vmatprep.subr.mxu0 0.0
    %1499 = vmatpush1.msra.mxu0 %v1431
    %1500 = vmatprep.subr.mxu0 0.0
    %1501 = vmatpush1.msra.mxu0 %v1432
    %1502 = vmatprep.subr.mxu0 0.0
    %1503 = vmatpush1.msra.mxu0 %v1433
    %1504 = vmatprep.subr.mxu0 0.0
    %1505 = vmatpush1.msra.mxu0 %v1434
    %1506 = vmatprep.subr.mxu0 0.0
    %1507 = vmatpush1.msra.mxu0 %v1435
    %1508 = vmatprep.subr.mxu0 0.0
    %1509 = vmatpush1.msra.mxu0 %v1436
    %1510 = vmatprep.subr.mxu0 0.0
    %1511 = vmatpush1.msra.mxu0 %v1437
    %1512 = vmatprep.subr.mxu0 0.0
    %1513 = vmatpush1.msra.mxu0 %v1438
    %1514 = vmatprep.subr.mxu0 0.0
    %1515 = vmatpush1.msra.mxu0 %v1439
    %1516 = vmatprep.subr.mxu0 0.0
    %1517 = vmatpush1.msra.mxu0 %v1440
    %1518 = vmatprep.subr.mxu0 0.0
    %1519 = vmatpush1.msra.mxu0 %v1441
    %1520 = vmatprep.subr.mxu0 0.0
    %1521 = vmatpush1.msra.mxu0 %v1442
    %1522 = vmatprep.subr.mxu0 0.0
    %1523 = vmatpush1.msra.mxu0 %v1443
    %1524 = vmatprep.subr.mxu0 0.0
    %1525 = vmatpush1.msra.mxu0 %v1444
    %1526 = vmatprep.subr.mxu0 0.0
    %1527 = vmatpush1.msra.mxu0 %v1445
    %1528 = vmatprep.mubr.f32.mxu0 %v1461
    %1529 = vmatmul.mubr.f32.gmra.mrb[0].mxu0 %v1460
    %v1530 = vpop.f32.mrb[0].mxu0
    %v1531 = vadd.f32 %v1451, %v1530
    %v1532 = vpop.f32.mrb[0].mxu0
    %1533 = vdwg.mxu0
    %v1534 = vmax.f32 %v1531, 0.0
    %v1535 = vld [vmem:[#allocation8] sm:$0xff]
    %v1536 = vld [vmem:[#allocation8 + $0x8] sm:$0xff]
    %v1537 = vld [vmem:[#allocation8 + $0x10] sm:$0xff]
    %v1538 = vld [vmem:[#allocation8 + $0x18] sm:$0xff]
    %v1539 = vld [vmem:[#allocation8 + $0x20] sm:$0xff]
    %v1540 = vld [vmem:[#allocation8 + $0x28] sm:$0xff]
    %v1541 = vld [vmem:[#allocation8 + $0x30] sm:$0xff]
    %v1542 = vld [vmem:[#allocation8 + $0x38] sm:$0xff]
    %v1543 = vld [vmem:[#allocation8 + $0x40] sm:$0xff]
    %v1544 = vld [vmem:[#allocation8 + $0x48] sm:$0xff]
    %v1545 = vld [vmem:[#allocation8 + $0x50] sm:$0xff]
    %v1546 = vld [vmem:[#allocation8 + $0x58] sm:$0xff]
    %v1547 = vld [vmem:[#allocation8 + $0x60] sm:$0xff]
    %v1548 = vld [vmem:[#allocation8 + $0x68] sm:$0xff]
    %v1549 = vld [vmem:[#allocation8 + $0x70] sm:$0xff]
    %v1550 = vld [vmem:[#allocation8 + $0x78] sm:$0xff]
    %v1551 = vld [vmem:[%s8] sm:$0x1]
    %v1553 = vlaneseq
    %v1554 = vshrl.u32 %v1553, 7
    %v1555 = vsub.s32 0, %v1554
    %v1556 = vrot.slane %v1551, %v1555
    %1558 = vmatprep.subr.mxu0 0.0
    %1559 = vmatpush1.msra.mxu0 %v1535
    %1560 = vmatprep.subr.mxu0 0.0
    %1561 = vmatpush1.msra.mxu0 %v1536
    %1562 = vmatprep.subr.mxu0 0.0
    %1563 = vmatpush1.msra.mxu0 %v1537
    %1564 = vmatprep.subr.mxu0 0.0
    %1565 = vmatpush1.msra.mxu0 %v1538
    %1566 = vmatprep.subr.mxu0 0.0
    %1567 = vmatpush1.msra.mxu0 %v1539
    %1568 = vmatprep.subr.mxu0 0.0
    %1569 = vmatpush1.msra.mxu0 %v1540
    %1570 = vmatprep.subr.mxu0 0.0
    %1571 = vmatpush1.msra.mxu0 %v1541
    %1572 = vmatprep.subr.mxu0 0.0
    %1573 = vmatpush1.msra.mxu0 %v1542
    %1574 = vmatprep.subr.mxu0 0.0
    %1575 = vmatpush1.msra.mxu0 %v1543
    %1576 = vmatprep.subr.mxu0 0.0
    %1577 = vmatpush1.msra.mxu0 %v1544
    %1578 = vmatprep.subr.mxu0 0.0
    %1579 = vmatpush1.msra.mxu0 %v1545
    %1580 = vmatprep.subr.mxu0 0.0
    %1581 = vmatpush1.msra.mxu0 %v1546
    %1582 = vmatprep.subr.mxu0 0.0
    %1583 = vmatpush1.msra.mxu0 %v1547
    %1584 = vmatprep.subr.mxu0 0.0
    %1585 = vmatpush1.msra.mxu0 %v1548
    %1586 = vmatprep.subr.mxu0 0.0
    %1587 = vmatpush1.msra.mxu0 %v1549
    %1588 = vmatprep.subr.mxu0 0.0
    %1589 = vmatpush1.msra.mxu0 %v1550
    %1590 = vmatprep.subr.mxu0 0.0
    %1591 = vmatpush1.msra.mxu0 0.0
    %1592 = vmatprep.subr.mxu0 0.0
    %1593 = vmatpush1.msra.mxu0 0.0
    %1594 = vmatprep.subr.mxu0 0.0
    %1595 = vmatpush1.msra.mxu0 0.0
    %1596 = vmatprep.subr.mxu0 0.0
    %1597 = vmatpush1.msra.mxu0 0.0
    %1598 = vmatprep.subr.mxu0 0.0
    %1599 = vmatpush1.msra.mxu0 0.0
    %1600 = vmatprep.subr.mxu0 0.0
    %1601 = vmatpush1.msra.mxu0 0.0
    %1602 = vmatprep.subr.mxu0 0.0
    %1603 = vmatpush1.msra.mxu0 0.0
    %1604 = vmatprep.subr.mxu0 0.0
    %1605 = vmatpush1.msra.mxu0 0.0
    %1606 = vmatprep.subr.mxu0 0.0
    %1607 = vmatpush1.msra.mxu0 0.0
    %1608 = vmatprep.subr.mxu0 0.0
    %1609 = vmatpush1.msra.mxu0 0.0
    %1610 = vmatprep.subr.mxu0 0.0
    %1611 = vmatpush1.msra.mxu0 0.0
    %1612 = vmatprep.subr.mxu0 0.0
    %1613 = vmatpush1.msra.mxu0 0.0
    %1614 = vmatprep.subr.mxu0 0.0
    %1615 = vmatpush1.msra.mxu0 0.0
    %1616 = vmatprep.subr.mxu0 0.0
    %1617 = vmatpush1.msra.mxu0 0.0
    %1618 = vmatprep.subr.mxu0 0.0
    %1619 = vmatpush1.msra.mxu0 0.0
    %1620 = vmatprep.subr.mxu0 0.0
    %1621 = vmatpush1.msra.mxu0 0.0
    %1622 = vmatprep.mubr.f32.mxu0 0.0
    %1623 = vmatmul.mubr.f32.gmra.mrb[0].mxu0 %v1534
    %v1624 = vpop.f32.mrb[0].mxu0
    %v1625 = vadd.f32 %v1556, %v1624
    %v1626 = vpop.f32.mrb[0].mxu0
    %1627 = vdwg.mxu0
    %v1628 = vmax.f32 %v1625, 0.0
    %v1629 = vld [vmem:[%s9] sm:$0xff]
    %v1630 = vld [vmem:[%s9 + $0x8] sm:$0xff]
    %v1631 = vld [vmem:[%s9 + $0x10] sm:$0xff]
    %v1632 = vld [vmem:[%s9 + $0x18] sm:$0xff]
    %v1633 = vld [vmem:[%s9 + $0x20] sm:$0xff]
    %v1634 = vld [vmem:[%s9 + $0x28] sm:$0xff]
    %v1635 = vld [vmem:[%s9 + $0x30] sm:$0xff]
    %v1636 = vld [vmem:[%s9 + $0x38] sm:$0xff]
    %v1637 = vld [vmem:[%s9 + $0x40] sm:$0xff]
    %v1638 = vld [vmem:[%s9 + $0x48] sm:$0xff]
    %v1639 = vld [vmem:[%s9 + $0x50] sm:$0xff]
    %v1640 = vld [vmem:[%s9 + $0x58] sm:$0xff]
    %v1641 = vld [vmem:[%s9 + $0x60] sm:$0xff]
    %v1642 = vld [vmem:[%s9 + $0x68] sm:$0xff]
    %v1643 = vld [vmem:[%s9 + $0x70] sm:$0xff]
    %v1644 = vld [vmem:[%s9 + $0x78] sm:$0xff]
    %v1645 = vld [vmem:[%s10] sm:$0x1]
    %v1647 = vlaneseq
    %v1648 = vshrl.u32 %v1647, 7
    %v1649 = vsub.s32 0, %v1648
    %v1650 = vrot.slane %v1645, %v1649
    %1652 = vmatprep.subr.mxu0 0.0
    %1653 = vmatpush1.msra.mxu0 %v1629
    %1654 = vmatprep.subr.mxu0 0.0
    %1655 = vmatpush1.msra.mxu0 %v1630
    %1656 = vmatprep.subr.mxu0 0.0
    %1657 = vmatpush1.msra.mxu0 %v1631
    %1658 = vmatprep.subr.mxu0 0.0
    %1659 = vmatpush1.msra.mxu0 %v1632
    %1660 = vmatprep.subr.mxu0 0.0
    %1661 = vmatpush1.msra.mxu0 %v1633
    %1662 = vmatprep.subr.mxu0 0.0
    %1663 = vmatpush1.msra.mxu0 %v1634
    %1664 = vmatprep.subr.mxu0 0.0
    %1665 = vmatpush1.msra.mxu0 %v1635
    %1666 = vmatprep.subr.mxu0 0.0
    %1667 = vmatpush1.msra.mxu0 %v1636
    %1668 = vmatprep.subr.mxu0 0.0
    %1669 = vmatpush1.msra.mxu0 %v1637
    %1670 = vmatprep.subr.mxu0 0.0
    %1671 = vmatpush1.msra.mxu0 %v1638
    %1672 = vmatprep.subr.mxu0 0.0
    %1673 = vmatpush1.msra.mxu0 %v1639
    %1674 = vmatprep.subr.mxu0 0.0
    %1675 = vmatpush1.msra.mxu0 %v1640
    %1676 = vmatprep.subr.mxu0 0.0
    %1677 = vmatpush1.msra.mxu0 %v1641
    %1678 = vmatprep.subr.mxu0 0.0
    %1679 = vmatpush1.msra.mxu0 %v1642
    %1680 = vmatprep.subr.mxu0 0.0
    %1681 = vmatpush1.msra.mxu0 %v1643
    %1682 = vmatprep.subr.mxu0 0.0
    %1683 = vmatpush1.msra.mxu0 %v1644
    %1684 = vmatprep.subr.mxu0 0.0
    %1685 = vmatpush1.msra.mxu0 0.0
    %1686 = vmatprep.subr.mxu0 0.0
    %1687 = vmatpush1.msra.mxu0 0.0
    %1688 = vmatprep.subr.mxu0 0.0
    %1689 = vmatpush1.msra.mxu0 0.0
    %1690 = vmatprep.subr.mxu0 0.0
    %1691 = vmatpush1.msra.mxu0 0.0
    %1692 = vmatprep.subr.mxu0 0.0
    %1693 = vmatpush1.msra.mxu0 0.0
    %1694 = vmatprep.subr.mxu0 0.0
    %1695 = vmatpush1.msra.mxu0 0.0
    %1696 = vmatprep.subr.mxu0 0.0
    %1697 = vmatpush1.msra.mxu0 0.0
    %1698 = vmatprep.subr.mxu0 0.0
    %1699 = vmatpush1.msra.mxu0 0.0
    %1700 = vmatprep.subr.mxu0 0.0
    %1701 = vmatpush1.msra.mxu0 0.0
    %1702 = vmatprep.subr.mxu0 0.0
    %1703 = vmatpush1.msra.mxu0 0.0
    %1704 = vmatprep.subr.mxu0 0.0
    %1705 = vmatpush1.msra.mxu0 0.0
    %1706 = vmatprep.subr.mxu0 0.0
    %1707 = vmatpush1.msra.mxu0 0.0
    %1708 = vmatprep.subr.mxu0 0.0
    %1709 = vmatpush1.msra.mxu0 0.0
    %1710 = vmatprep.subr.mxu0 0.0
    %1711 = vmatpush1.msra.mxu0 0.0
    %1712 = vmatprep.subr.mxu0 0.0
    %1713 = vmatpush1.msra.mxu0 0.0
    %1714 = vmatprep.subr.mxu0 0.0
    %1715 = vmatpush1.msra.mxu0 0.0
    %1716 = vmatprep.mubr.f32.mxu0 0.0
    %1717 = vmatmul.mubr.f32.gmra.mrb[0].mxu0 %v1628
    %v1718 = vpop.f32.mrb[0].mxu0
    %v1719 = vadd.f32 %v1650, %v1718
    %v1720 = vpop.f32.mrb[0].mxu0
    %1721 = vdwg.mxu0
    %1722 = vst [vmem:[#allocation9] sm:$0x3] %v1719
    // Predicated region
    $region58: #{_lambda_.1} parent=1 // pred_check
      _
    $region59: #{_lambda_.1} parent=1 // pred_check_branch
      %1724 = sbr.rel (0) target = $region61
    $region60: #{_lambda_.1} parent=1 // pred_region
      %s1726 = ssub.s32 32, 32
      %1727 = vsyncadd [#allocation5], %s1726
      %s1729 = sshll.u32 [#allocation9], 4
      %s1730 = int_to_ptr.vmem [resolvable:$true] %s1729
      %1732 = dma.vmem_to_hbm [thread:$0]  %s1730, 32, %s11, [#allocation5]
    $region61: #{_lambda_.1} parent=1 // pred_fallthru
      _
    // Predicated region
    $region62: #{_lambda_.1} parent=1 // pred_check
      _
    $region63: #{_lambda_.1} parent=1 // pred_check_branch
      %1734 = sbr.rel (0) target = $region65
    $region64: #{_lambda_.1} parent=1 // pred_region
      %1735 = dma.done [#allocation5], 32
    $region65: #{_lambda_.1} parent=1 // pred_fallthru
      _
    %1736 = vsyncpa [#allocation4], 1
    %1737 = vsyncpa [#allocation7], 1
    %1738 = vsyncpa [#allocation5], 1

</llo_original>
